<compile_context>
chip_gen: v5e
topology: v5e:2x2
jax: 0.10.0
libtpu: 0.0.40
codegen_flags: <defaults>
</compile_context>

<pallas_src>
import jax
import jax.numpy as jnp
from jax.experimental import pallas as pl
from jax.experimental.pallas import tpu as pltpu


def aux_head_kernel(x_ref, w1f_ref, s1_ref, b1_ref,
                    w2_ref, s2_ref, b2_ref, wfc_ref, bfc_ref, out_ref):
    """One grid step = TB images.

    x_ref   : (TB, C*64)  f32   NCHW activation, flattened as c*64 + h*8 + w
    w1f_ref : (C*64, 512) bf16  fused AvgPool(5,3) + Conv1x1 weight, col = p*128 + o
    s1/b1   : (1, 512)    f32   folded BN1 scale / bias, tiled per pool position
    w2_ref  : (512, 768)  bf16  2x2 conv weight, row = p*128 + c
    s2/b2   : (1, 768)    f32   folded BN2 scale / bias
    wfc_ref : (768, NCP)  bf16  classifier weight (transposed, lane-padded)
    bfc_ref : (1, NCP)    f32   classifier bias (lane-padded)
    out_ref : (TB, NCP)   f32
    """
    # ReLU (f32 on VPU), then bf16 operands into the fused pool+conv1 matmul.
    xr = jnp.maximum(x_ref[...], 0.0).astype(jnp.bfloat16)            # (TB, C*64)

    # AvgPool + Conv1x1 fused: one (TB, C*64) x (C*64, 512) MXU matmul, f32 acc.
    h1 = jnp.dot(xr, w1f_ref[...], preferred_element_type=jnp.float32)  # (TB, 512)
    h1 = jnp.maximum(h1 * s1_ref[...] + b1_ref[...], 0.0)               # BN1 + ReLU (f32)

    # 2x2 conv over the 2x2 map == single (TB, 512) x (512, 768) matmul, then BN + ReLU.
    h2 = jnp.dot(h1.astype(jnp.bfloat16), w2_ref[...],
                 preferred_element_type=jnp.float32)                    # (TB, 768)
    h2 = jnp.maximum(h2 * s2_ref[...] + b2_ref[...], 0.0)

    # Classifier (lane-padded output -> full-lane stores).
    out_ref[...] = (jnp.dot(h2.astype(jnp.bfloat16), wfc_ref[...],
                            preferred_element_type=jnp.float32)
                    + bfc_ref[...])


def _pool_matrix():
    """(4, 64): row p = flattened 5x5 window (value 1/25) for output p = i*2 + j."""
    rows = []
    for i in range(2):
        for j in range(2):
            row = [0.0] * 64
            for h in range(3 * i, 3 * i + 5):
                for w in range(3 * j, 3 * j + 5):
                    row[h * 8 + w] = 1.0 / 25.0
            rows.append(row)
    return jnp.array(rows, dtype=jnp.float32)


def _const_spec(shape):
    """Constant (grid-invariant) block: fetched once, single-buffered to save VMEM."""
    return pl.BlockSpec(shape, lambda *_: (0,) * len(shape),
                        pipeline_mode=pl.Buffered(1))


def aux_head_forward(x_nchw, params, num_classes, *, tb_max=256, eps=1e-5):
    """x_nchw: (N, C, 8, 8) float32. Returns (N, num_classes) float32."""
    N, C, H, W = x_nchw.shape
    assert H == 8 and W == 8, "AuxiliaryHeadCIFAR assumes 8x8 input"
    CF = C * H * W                                            # flattened feature dim

    # NCHW consumed directly; flatten fully (free, contiguous, lane-dense).
    x = x_nchw.reshape(N, CF)

    # Batch tile: fold TB images into the matmul M dimension per grid step.
    # Ragged N handled by a non-dividing last block (Pallas masks tail writes);
    # no wrapper-side jnp.pad of the activation.
    TB = N if N <= tb_max else tb_max
    grid = (pl.cdiv(N, TB),)

    # Fold inference-mode BatchNorm into per-channel scale / bias (kept f32).
    s1 = params["g1"] / jnp.sqrt(params["rv1"] + eps)
    b1 = params["be1"] - params["rm1"] * s1
    s2 = params["g2"] / jnp.sqrt(params["rv2"] + eps)
    b2 = params["be2"] - params["rm2"] * s2

    # Fused AvgPool(5,3) + Conv1x1 weight: (C*64, 4*128), row = c*64+s, col = p*128+o.
    poolm = _pool_matrix()                                             # (4, 64)
    w1c = params["w1"][:, :, 0, 0]                                     # (128, C) = (o, c)
    w1f = jnp.einsum('ps,oc->cspo', poolm, w1c).reshape(CF, 512)       # (C*64, 512)
    s1t = jnp.tile(s1, 4).reshape(1, 512)                              # col = p*128+o
    b1t = jnp.tile(b1, 4).reshape(1, 512)

    # conv2 weight (768, 128, 2, 2) -> (i, j, c, o) -> (512, 768); row = (i*2+j)*128 + c
    w2 = jnp.transpose(params["w2"], (2, 3, 1, 0)).reshape(512, 768)

    # Lane-pad the classifier so output stores are full 128-lane wide.
    ncp = ((num_classes + 127) // 128) * 128
    wfc = jnp.zeros((768, ncp), jnp.float32).at[:, :num_classes].set(params["wfc"].T)
    bfc = jnp.zeros((1, ncp), jnp.float32).at[:, :num_classes].set(params["bfc"][None, :])

    # bf16 MXU operands (f32 accumulation via preferred_element_type in the kernel).
    w1f = w1f.astype(jnp.bfloat16)
    w2 = w2.astype(jnp.bfloat16)
    wfc = wfc.astype(jnp.bfloat16)

    out = pl.pallas_call(
        aux_head_kernel,
        out_shape=jax.ShapeDtypeStruct((N, ncp), jnp.float32),
        grid_spec=pltpu.PrefetchScalarGridSpec(
            num_scalar_prefetch=0,
            grid=grid,
            in_specs=[
                pl.BlockSpec((TB, CF), lambda n: (n, 0)),              # x (batch-tiled)
                _const_spec((CF, 512)),                                # fused pool+conv1
                _const_spec((1, 512)),                                 # s1 (tiled)
                _const_spec((1, 512)),                                 # b1 (tiled)
                _const_spec((512, 768)),                               # w2 (fused 2x2)
                _const_spec((1, 768)),                                 # s2
                _const_spec((1, 768)),                                 # b2
                _const_spec((768, ncp)),                               # wfc (lane-padded)
                _const_spec((1, ncp)),                                 # bfc (lane-padded)
            ],
            out_specs=pl.BlockSpec((TB, ncp), lambda n: (n, 0)),
        ),
        compiler_params=pltpu.CompilerParams(
            dimension_semantics=("parallel",)),
    )(x, w1f, s1t, b1t, w2, s2.reshape(1, 768), b2.reshape(1, 768), wfc, bfc)

    return out[:, :num_classes]


def ref_forward(x, p, eps=1e-5):
    """Pure-JAX f32 reference mirroring the PyTorch module (NCHW, inference-mode BN)."""
    xr = jnp.maximum(x, 0.0)
    pooled = jnp.stack(
        [jnp.stack([jnp.mean(xr[:, :, 3 * i:3 * i + 5, 3 * j:3 * j + 5],
                             axis=(2, 3)) for j in range(2)], axis=-1)
         for i in range(2)], axis=-2)                                  # (N, C, 2, 2)
    h1 = jnp.einsum('ncij,oc->noij', pooled, p["w1"][:, :, 0, 0])
    h1 = ((h1 - p["rm1"][None, :, None, None])
          / jnp.sqrt(p["rv1"][None, :, None, None] + eps)
          * p["g1"][None, :, None, None] + p["be1"][None, :, None, None])
    h1 = jnp.maximum(h1, 0.0)
    h2 = jnp.einsum('ncij,ocij->no', h1, p["w2"])                      # (N, 768)
    h2 = (h2 - p["rm2"][None, :]) / jnp.sqrt(p["rv2"][None, :] + eps) * p["g2"] + p["be2"]
    h2 = jnp.maximum(h2, 0.0)
    return h2 @ p["wfc"].T + p["bfc"]


if __name__ == "__main__":
    C, num_classes = 4, 10
    key = jax.random.PRNGKey(0)
    ks = jax.random.split(key, 16)

    params = {
        # conv1x1: (128, C, 1, 1)
        "w1": 0.3 * jax.random.normal(ks[1], (128, C, 1, 1), dtype=jnp.float32),
        "g1": 1.0 + 0.1 * jax.random.normal(ks[2], (128,), dtype=jnp.float32),
        "be1": 0.1 * jax.random.normal(ks[3], (128,), dtype=jnp.float32),
        "rm1": 0.1 * jax.random.normal(ks[4], (128,), dtype=jnp.float32),
        "rv1": 0.5 + jax.random.uniform(ks[5], (128,), dtype=jnp.float32),
        # conv2x2: (768, 128, 2, 2)
        "w2": 0.05 * jax.random.normal(ks[6], (768, 128, 2, 2), dtype=jnp.float32),
        "g2": 1.0 + 0.1 * jax.random.normal(ks[7], (768,), dtype=jnp.float32),
        "be2": 0.1 * jax.random.normal(ks[8], (768,), dtype=jnp.float32),
        "rm2": 0.1 * jax.random.normal(ks[9], (768,), dtype=jnp.float32),
        "rv2": 0.5 + jax.random.uniform(ks[10], (768,), dtype=jnp.float32),
        # classifier: Linear(768, num_classes)
        "wfc": 0.05 * jax.random.normal(ks[11], (num_classes, 768), dtype=jnp.float32),
        "bfc": 0.01 * jax.random.normal(ks[12], (num_classes,), dtype=jnp.float32),
    }

    # bf16 MXU operands (f32 accumulation) -> relaxed tolerances vs. f32 reference.
    RTOL, ATOL = 2e-2, 2e-2

    # Test 1: tiny batch, single grid step (block == full batch dim).
    x1 = jax.random.normal(ks[0], (2, C, 8, 8), dtype=jnp.float32)
    out1 = jax.block_until_ready(aux_head_forward(x1, params, num_classes))
    ref1 = ref_forward(x1, params)
    assert out1.shape == (2, num_classes)
    assert jnp.allclose(out1, ref1, rtol=RTOL, atol=ATOL), (
        f"mismatch (test1): max abs err {jnp.max(jnp.abs(out1 - ref1))}")

    # Test 2: batch not divisible by the tile -> multi-step grid + masked ragged tail
    # (no wrapper-side padding of the activation).
    x2 = jax.random.normal(ks[13], (10, C, 8, 8), dtype=jnp.float32)
    out2 = jax.block_until_ready(aux_head_forward(x2, params, num_classes, tb_max=8))
    ref2 = ref_forward(x2, params)
    assert out2.shape == (10, num_classes)
    assert jnp.allclose(out2, ref2, rtol=RTOL, atol=ATOL), (
        f"mismatch (test2): max abs err {jnp.max(jnp.abs(out2 - ref2))}")

    print("KERNEL_OK")
</pallas_src>

<mosaic_0001>
module attributes {stable_mosaic.version = 11 : i64} {
  func.func @aux_head_kernel(%arg0: i32, %arg1: memref<2x256xf32, #tpu.memory_space<vmem>>, %arg2: memref<256x512xbf16, #tpu.memory_space<vmem>>, %arg3: memref<1x512xf32, #tpu.memory_space<vmem>>, %arg4: memref<1x512xf32, #tpu.memory_space<vmem>>, %arg5: memref<512x768xbf16, #tpu.memory_space<vmem>>, %arg6: memref<1x768xf32, #tpu.memory_space<vmem>>, %arg7: memref<1x768xf32, #tpu.memory_space<vmem>>, %arg8: memref<768x128xbf16, #tpu.memory_space<vmem>>, %arg9: memref<1x128xf32, #tpu.memory_space<vmem>>, %arg10: memref<2x128xf32, #tpu.memory_space<vmem>>) attributes {dimension_semantics = [#tpu.dimension_semantics<parallel>], iteration_bounds = array<i64: 1>, scalar_prefetch = 0 : i64, scratch_operands = 0 : i64, tpu.core_type = #tpu.core_type<tc>, window_params = [{transform_indices = @transform_0, window_bounds = array<i64: 2, 256>}, {pipeline_mode = #tpu.pipeline_mode<synchronous>, transform_indices = @transform_1, window_bounds = array<i64: 256, 512>}, {pipeline_mode = #tpu.pipeline_mode<synchronous>, transform_indices = @transform_2, window_bounds = array<i64: 1, 512>}, {pipeline_mode = #tpu.pipeline_mode<synchronous>, transform_indices = @transform_3, window_bounds = array<i64: 1, 512>}, {pipeline_mode = #tpu.pipeline_mode<synchronous>, transform_indices = @transform_4, window_bounds = array<i64: 512, 768>}, {pipeline_mode = #tpu.pipeline_mode<synchronous>, transform_indices = @transform_5, window_bounds = array<i64: 1, 768>}, {pipeline_mode = #tpu.pipeline_mode<synchronous>, transform_indices = @transform_6, window_bounds = array<i64: 1, 768>}, {pipeline_mode = #tpu.pipeline_mode<synchronous>, transform_indices = @transform_7, window_bounds = array<i64: 768, 128>}, {pipeline_mode = #tpu.pipeline_mode<synchronous>, transform_indices = @transform_8, window_bounds = array<i64: 1, 128>}, {transform_indices = @transform_9, window_bounds = array<i64: 2, 128>}]} {
    %c0 = arith.constant 0 : index
    %c0_0 = arith.constant 0 : index
    %0 = vector.load %arg1[%c0, %c0_0] : memref<2x256xf32, #tpu.memory_space<vmem>>, vector<2x256xf32>
    %cst = arith.constant 0.000000e+00 : f32
    %1 = vector.broadcast %cst : f32 to vector<2x256xf32>
    %2 = arith.maximumf %0, %1 : vector<2x256xf32>
    %3 = arith.truncf %2 : vector<2x256xf32> to vector<2x256xbf16>
    %c0_1 = arith.constant 0 : index
    %c0_2 = arith.constant 0 : index
    %4 = vector.load %arg2[%c0_1, %c0_2] : memref<256x512xbf16, #tpu.memory_space<vmem>>, vector<256x512xbf16>
    %cst_3 = arith.constant dense<0.000000e+00> : vector<2x512xf32>
    %5 = tpu.matmul %3, %4, %cst_3 {dimension_numbers = #tpu.dot_dimension_numbers<[1], [0], [0], [1], [0, 0, 1, 1], [], []>} : vector<2x256xbf16>, vector<256x512xbf16>, vector<2x512xf32> -> vector<2x512xf32>
    %c0_4 = arith.constant 0 : index
    %c0_5 = arith.constant 0 : index
    %6 = vector.load %arg3[%c0_4, %c0_5] : memref<1x512xf32, #tpu.memory_space<vmem>>, vector<1x512xf32>
    %7 = vector.broadcast %6 : vector<1x512xf32> to vector<2x512xf32>
    %8 = arith.mulf %5, %7 : vector<2x512xf32>
    %c0_6 = arith.constant 0 : index
    %c0_7 = arith.constant 0 : index
    %9 = vector.load %arg4[%c0_6, %c0_7] : memref<1x512xf32, #tpu.memory_space<vmem>>, vector<1x512xf32>
    %10 = vector.broadcast %9 : vector<1x512xf32> to vector<2x512xf32>
    %11 = arith.addf %8, %10 : vector<2x512xf32>
    %cst_8 = arith.constant 0.000000e+00 : f32
    %12 = vector.broadcast %cst_8 : f32 to vector<2x512xf32>
    %13 = arith.maximumf %11, %12 : vector<2x512xf32>
    %14 = arith.truncf %13 : vector<2x512xf32> to vector<2x512xbf16>
    %c0_9 = arith.constant 0 : index
    %c0_10 = arith.constant 0 : index
    %15 = vector.load %arg5[%c0_9, %c0_10] : memref<512x768xbf16, #tpu.memory_space<vmem>>, vector<512x768xbf16>
    %cst_11 = arith.constant dense<0.000000e+00> : vector<2x768xf32>
    %16 = tpu.matmul %14, %15, %cst_11 {dimension_numbers = #tpu.dot_dimension_numbers<[1], [0], [0], [1], [0, 0, 1, 1], [], []>} : vector<2x512xbf16>, vector<512x768xbf16>, vector<2x768xf32> -> vector<2x768xf32>
    %c0_12 = arith.constant 0 : index
    %c0_13 = arith.constant 0 : index
    %17 = vector.load %arg6[%c0_12, %c0_13] : memref<1x768xf32, #tpu.memory_space<vmem>>, vector<1x768xf32>
    %18 = vector.broadcast %17 : vector<1x768xf32> to vector<2x768xf32>
    %19 = arith.mulf %16, %18 : vector<2x768xf32>
    %c0_14 = arith.constant 0 : index
    %c0_15 = arith.constant 0 : index
    %20 = vector.load %arg7[%c0_14, %c0_15] : memref<1x768xf32, #tpu.memory_space<vmem>>, vector<1x768xf32>
    %21 = vector.broadcast %20 : vector<1x768xf32> to vector<2x768xf32>
    %22 = arith.addf %19, %21 : vector<2x768xf32>
    %cst_16 = arith.constant 0.000000e+00 : f32
    %23 = vector.broadcast %cst_16 : f32 to vector<2x768xf32>
    %24 = arith.maximumf %22, %23 : vector<2x768xf32>
    %25 = arith.truncf %24 : vector<2x768xf32> to vector<2x768xbf16>
    %c0_17 = arith.constant 0 : index
    %c0_18 = arith.constant 0 : index
    %26 = vector.load %arg8[%c0_17, %c0_18] : memref<768x128xbf16, #tpu.memory_space<vmem>>, vector<768x128xbf16>
    %cst_19 = arith.constant dense<0.000000e+00> : vector<2x128xf32>
    %27 = tpu.matmul %25, %26, %cst_19 {dimension_numbers = #tpu.dot_dimension_numbers<[1], [0], [0], [1], [0, 0, 1, 1], [], []>} : vector<2x768xbf16>, vector<768x128xbf16>, vector<2x128xf32> -> vector<2x128xf32>
    %c0_20 = arith.constant 0 : index
    %c0_21 = arith.constant 0 : index
    %28 = vector.load %arg9[%c0_20, %c0_21] : memref<1x128xf32, #tpu.memory_space<vmem>>, vector<1x128xf32>
    %29 = vector.broadcast %28 : vector<1x128xf32> to vector<2x128xf32>
    %30 = arith.addf %27, %29 : vector<2x128xf32>
    %c0_22 = arith.constant 0 : index
    %c0_23 = arith.constant 0 : index
    %31 = vector.load %arg10[%c0_22, %c0_23] : memref<2x128xf32, #tpu.memory_space<vmem>>, vector<2x128xf32>
    tpu.vector_store %arg10[%c0_22, %c0_23], %30 {strides = array<i32>} : memref<2x128xf32, #tpu.memory_space<vmem>>, vector<2x128xf32>,
    return
  }
  func.func @transform_0(%arg0: i32) -> (i32, i32) {
    %c0_i32 = arith.constant 0 : i32
    %c0_i32_0 = arith.constant 0 : i32
    return %arg0, %c0_i32 : i32, i32
  }
  func.func @transform_1(%arg0: i32) -> (i32, i32) {
    %c0_i32 = arith.constant 0 : i32
    %c0_i32_0 = arith.constant 0 : i32
    %c0_i32_1 = arith.constant 0 : i32
    return %c0_i32, %c0_i32_0 : i32, i32
  }
  func.func @transform_2(%arg0: i32) -> (i32, i32) {
    %c0_i32 = arith.constant 0 : i32
    %c0_i32_0 = arith.constant 0 : i32
    %c0_i32_1 = arith.constant 0 : i32
    return %c0_i32, %c0_i32_0 : i32, i32
  }
  func.func @transform_3(%arg0: i32) -> (i32, i32) {
    %c0_i32 = arith.constant 0 : i32
    %c0_i32_0 = arith.constant 0 : i32
    %c0_i32_1 = arith.constant 0 : i32
    return %c0_i32, %c0_i32_0 : i32, i32
  }
  func.func @transform_4(%arg0: i32) -> (i32, i32) {
    %c0_i32 = arith.constant 0 : i32
    %c0_i32_0 = arith.constant 0 : i32
    %c0_i32_1 = arith.constant 0 : i32
    return %c0_i32, %c0_i32_0 : i32, i32
  }
  func.func @transform_5(%arg0: i32) -> (i32, i32) {
    %c0_i32 = arith.constant 0 : i32
    %c0_i32_0 = arith.constant 0 : i32
    %c0_i32_1 = arith.constant 0 : i32
    return %c0_i32, %c0_i32_0 : i32, i32
  }
  func.func @transform_6(%arg0: i32) -> (i32, i32) {
    %c0_i32 = arith.constant 0 : i32
    %c0_i32_0 = arith.constant 0 : i32
    %c0_i32_1 = arith.constant 0 : i32
    return %c0_i32, %c0_i32_0 : i32, i32
  }
  func.func @transform_7(%arg0: i32) -> (i32, i32) {
    %c0_i32 = arith.constant 0 : i32
    %c0_i32_0 = arith.constant 0 : i32
    %c0_i32_1 = arith.constant 0 : i32
    return %c0_i32, %c0_i32_0 : i32, i32
  }
  func.func @transform_8(%arg0: i32) -> (i32, i32) {
    %c0_i32 = arith.constant 0 : i32
    %c0_i32_0 = arith.constant 0 : i32
    %c0_i32_1 = arith.constant 0 : i32
    return %c0_i32, %c0_i32_0 : i32, i32
  }
  func.func @transform_9(%arg0: i32) -> (i32, i32) {
    %c0_i32 = arith.constant 0 : i32
    %c0_i32_0 = arith.constant 0 : i32
    return %arg0, %c0_i32 : i32, i32
  }
}

</mosaic_0001>

<llo_original>
// kernel: tpu_custom_call.1
$region0: #{tpu_custom_call.1}
  #allocation0 [shape = 'u32[]', space=smem, size = 0x4, offset = 0x4, fixed_abs, tag = 'smem constant byte address 0x4 - core index']
  #allocation1 [shape = 'u32[72,128]{1,0:T(1,128)}', space=vmem, size = 0x9000, scoped, tag = 'internal scratch']
  %s0 = inlined_call_operand.hbm [shape: f32[2,256], index: 0, kind: input, shape index: {}]
  %s1 = inlined_call_operand.hbm [shape: bf16[256,512], index: 1, kind: input, shape index: {}]
  %s2 = inlined_call_operand.hbm [shape: f32[1,512], index: 2, kind: input, shape index: {}]
  %s3 = inlined_call_operand.hbm [shape: f32[1,512], index: 3, kind: input, shape index: {}]
  %s4 = inlined_call_operand.hbm [shape: bf16[512,768], index: 4, kind: input, shape index: {}]
  %s5 = inlined_call_operand.hbm [shape: f32[1,768], index: 5, kind: input, shape index: {}]
  %s6 = inlined_call_operand.hbm [shape: f32[1,768], index: 6, kind: input, shape index: {}]
  %s7 = inlined_call_operand.hbm [shape: bf16[768,128], index: 7, kind: input, shape index: {}]
  %s8 = inlined_call_operand.vmem [shape: f32[1,128], index: 8, kind: input, shape index: {}]
  %s9 = inlined_call_operand.hbm [shape: f32[2,128], index: 9, kind: output, shape index: {}]
  %s10 = sld [smem:[#allocation0]]
  $region78: #{tpu_custom_call.1} parent=0
    _
  %s12 = ssub.s32 1, %s10
  %s13 = scalar_select 0, %s12, %s10
  $region1: #{tpu_custom_call.1} parent=0
    #allocation2 [shape = 'u8[2048]{0}', space=vmem, size = 0x800, scoped, tag = 'input window, operand 0, single buffered']
    #allocation3 [shape = 's32[1]{0}', space=sflag, size = 0x4, scoped, tag = 'scoped memory for tpu_custom_call.1']
    #allocation4 [shape = 's32[1]{0}', space=sflag, size = 0x4, scoped, tag = 'scoped memory for tpu_custom_call.1']
    #allocation5 [shape = 'u8[262144]{0}', space=vmem, size = 0x40000, scoped, tag = 'input window, operand 1, single buffered']
    #allocation6 [shape = 's32[1]{0}', space=sflag, size = 0x4, scoped, tag = 'scoped memory for tpu_custom_call.1']
    #allocation7 [shape = 'u8[2048]{0}', space=vmem, size = 0x800, scoped, tag = 'input window, operand 2, single buffered']
    #allocation8 [shape = 'u8[2048]{0}', space=vmem, size = 0x800, scoped, tag = 'input window, operand 3, single buffered']
    #allocation9 [shape = 's32[1]{0}', space=sflag, size = 0x4, scoped, tag = 'scoped memory for tpu_custom_call.1']
    #allocation10 [shape = 'u8[786432]{0}', space=vmem, size = 0xc0000, scoped, tag = 'input window, operand 4, single buffered']
    #allocation11 [shape = 'u8[3072]{0}', space=vmem, size = 0xc00, scoped, tag = 'input window, operand 5, single buffered']
    #allocation12 [shape = 's32[1]{0}', space=sflag, size = 0x4, scoped, tag = 'scoped memory for tpu_custom_call.1']
    #allocation13 [shape = 'u8[3072]{0}', space=vmem, size = 0xc00, scoped, tag = 'input window, operand 6, single buffered']
    #allocation14 [shape = 'u8[196608]{0}', space=vmem, size = 0x30000, scoped, tag = 'input window, operand 7, single buffered']
    #allocation15 [shape = 's32[1]{0}', space=sflag, size = 0x4, scoped, tag = 'scoped memory for tpu_custom_call.1']
    #allocation16 [shape = 'u8[1024]{0}', space=vmem, size = 0x400, scoped, tag = 'output window, operand 0, single buffered']
    %14 = vsyncpa [#allocation3], 0
    %15 = vsyncpa [#allocation6], 0
    %16 = vsyncpa [#allocation9], 0
    %17 = vsyncpa [#allocation12], 0
    %18 = vsyncpa [#allocation15], 0
    %19 = vsyncpa [#allocation4], 0
    // Predicated region
    $region2: #{tpu_custom_call.1} parent=1 // pred_check
      _
    $region3: #{tpu_custom_call.1} parent=1 // pred_check_branch
      %21 = sbr.rel (0) target = $region5
    $region4: #{tpu_custom_call.1} parent=1 // pred_region
      %23 = vsyncadd [#allocation3], 0
      %s25 = sshll.u32 %s0, 4
      %s26 = int_to_ptr.hbm [resolvable:$true] %s25
      %s27 = sshll.u32 [#allocation2], 4
      %s28 = int_to_ptr.vmem [resolvable:$true] %s27
      %30 = dma.hbm_to_vmem [thread:$0]  %s26, 64, %s28, [#allocation3]
    $region5: #{tpu_custom_call.1} parent=1 // pred_fallthru
      _
    // Predicated region
    $region6: #{tpu_custom_call.1} parent=1 // pred_check
      _
    $region7: #{tpu_custom_call.1} parent=1 // pred_check_branch
      %32 = sbr.rel (0) target = $region9
    $region8: #{tpu_custom_call.1} parent=1 // pred_region
      %34 = vsyncadd [#allocation6], 0
      %s35 = sshll.u32 %s1, 4
      %s36 = int_to_ptr.hbm [resolvable:$true] %s35
      %s37 = sshll.u32 [#allocation5], 4
      %s38 = int_to_ptr.vmem [resolvable:$true] %s37
      %43 = dma.hbm_to_vmem [thread:$0]  %s36, 8192, %s38, [#allocation6], 256, 256, 16
    $region9: #{tpu_custom_call.1} parent=1 // pred_fallthru
      _
    // Predicated region
    $region10: #{tpu_custom_call.1} parent=1 // pred_check
      _
    $region11: #{tpu_custom_call.1} parent=1 // pred_check_branch
      %45 = sbr.rel (0) target = $region13
    $region12: #{tpu_custom_call.1} parent=1 // pred_region
      %47 = vsyncadd [#allocation6], 0
      %s49 = sshll.u32 %s2, 4
      %s50 = int_to_ptr.hbm [resolvable:$true] %s49
      %s51 = sshll.u32 [#allocation7], 4
      %s52 = int_to_ptr.vmem [resolvable:$true] %s51
      %54 = dma.hbm_to_vmem [thread:$0]  %s50, 64, %s52, [#allocation6]
    $region13: #{tpu_custom_call.1} parent=1 // pred_fallthru
      _
    // Predicated region
    $region14: #{tpu_custom_call.1} parent=1 // pred_check
      _
    $region15: #{tpu_custom_call.1} parent=1 // pred_check_branch
      %56 = sbr.rel (0) target = $region17
    $region16: #{tpu_custom_call.1} parent=1 // pred_region
      %58 = vsyncadd [#allocation9], 0
      %s60 = sshll.u32 %s3, 4
      %s61 = int_to_ptr.hbm [resolvable:$true] %s60
      %s62 = sshll.u32 [#allocation8], 4
      %s63 = int_to_ptr.vmem [resolvable:$true] %s62
      %65 = dma.hbm_to_vmem [thread:$0]  %s61, 64, %s63, [#allocation9]
    $region17: #{tpu_custom_call.1} parent=1 // pred_fallthru
      _
    // Predicated region
    $region18: #{tpu_custom_call.1} parent=1 // pred_check
      _
    $region19: #{tpu_custom_call.1} parent=1 // pred_check_branch
      %67 = sbr.rel (0) target = $region21
    $region20: #{tpu_custom_call.1} parent=1 // pred_region
      %69 = vsyncadd [#allocation9], 0
      %s70 = sshll.u32 %s4, 4
      %s71 = int_to_ptr.hbm [resolvable:$true] %s70
      %s72 = sshll.u32 [#allocation10], 4
      %s73 = int_to_ptr.vmem [resolvable:$true] %s72
      %78 = dma.hbm_to_vmem [thread:$0]  %s71, 24576, %s73, [#allocation9], 384, 384, 24
    $region21: #{tpu_custom_call.1} parent=1 // pred_fallthru
      _
    // Predicated region
    $region22: #{tpu_custom_call.1} parent=1 // pred_check
      _
    $region23: #{tpu_custom_call.1} parent=1 // pred_check_branch
      %80 = sbr.rel (0) target = $region25
    $region24: #{tpu_custom_call.1} parent=1 // pred_region
      %82 = vsyncadd [#allocation12], 0
      %s84 = sshll.u32 %s5, 4
      %s85 = int_to_ptr.hbm [resolvable:$true] %s84
      %s86 = sshll.u32 [#allocation11], 4
      %s87 = int_to_ptr.vmem [resolvable:$true] %s86
      %89 = dma.hbm_to_vmem [thread:$0]  %s85, 96, %s87, [#allocation12]
    $region25: #{tpu_custom_call.1} parent=1 // pred_fallthru
      _
    // Predicated region
    $region26: #{tpu_custom_call.1} parent=1 // pred_check
      _
    $region27: #{tpu_custom_call.1} parent=1 // pred_check_branch
      %91 = sbr.rel (0) target = $region29
    $region28: #{tpu_custom_call.1} parent=1 // pred_region
      %93 = vsyncadd [#allocation12], 0
      %s95 = sshll.u32 %s6, 4
      %s96 = int_to_ptr.hbm [resolvable:$true] %s95
      %s97 = sshll.u32 [#allocation13], 4
      %s98 = int_to_ptr.vmem [resolvable:$true] %s97
      %100 = dma.hbm_to_vmem [thread:$0]  %s96, 96, %s98, [#allocation12]
    $region29: #{tpu_custom_call.1} parent=1 // pred_fallthru
      _
    // Predicated region
    $region30: #{tpu_custom_call.1} parent=1 // pred_check
      _
    $region31: #{tpu_custom_call.1} parent=1 // pred_check_branch
      %102 = sbr.rel (0) target = $region33
    $region32: #{tpu_custom_call.1} parent=1 // pred_region
      %104 = vsyncadd [#allocation15], 0
      %s105 = sshll.u32 %s7, 4
      %s106 = int_to_ptr.hbm [resolvable:$true] %s105
      %s107 = sshll.u32 [#allocation14], 4
      %s108 = int_to_ptr.vmem [resolvable:$true] %s107
      %113 = dma.hbm_to_vmem [thread:$0]  %s106, 6144, %s108, [#allocation15], 64, 64, 4
    $region33: #{tpu_custom_call.1} parent=1 // pred_fallthru
      _
    // Predicated region
    $region34: #{tpu_custom_call.1} parent=1 // pred_check
      _
    $region35: #{tpu_custom_call.1} parent=1 // pred_check_branch
      %115 = sbr.rel (0) target = $region37
    $region36: #{tpu_custom_call.1} parent=1 // pred_region
      _
    $region37: #{tpu_custom_call.1} parent=1 // pred_fallthru
      _
    // Predicated region
    $region38: #{tpu_custom_call.1} parent=1 // pred_check
      _
    $region39: #{tpu_custom_call.1} parent=1 // pred_check_branch
      %117 = sbr.rel (0) target = $region41
    $region40: #{tpu_custom_call.1} parent=1 // pred_region
      %119 = dma.done [#allocation3], 64
    $region41: #{tpu_custom_call.1} parent=1 // pred_fallthru
      _
    // Predicated region
    $region42: #{tpu_custom_call.1} parent=1 // pred_check
      _
    $region43: #{tpu_custom_call.1} parent=1 // pred_check_branch
      %121 = sbr.rel (0) target = $region45
    $region44: #{tpu_custom_call.1} parent=1 // pred_region
      %123 = dma.done [#allocation6], 8192
    $region45: #{tpu_custom_call.1} parent=1 // pred_fallthru
      _
    // Predicated region
    $region46: #{tpu_custom_call.1} parent=1 // pred_check
      _
    $region47: #{tpu_custom_call.1} parent=1 // pred_check_branch
      %125 = sbr.rel (0) target = $region49
    $region48: #{tpu_custom_call.1} parent=1 // pred_region
      %127 = dma.done [#allocation6], 64
    $region49: #{tpu_custom_call.1} parent=1 // pred_fallthru
      _
    // Predicated region
    $region50: #{tpu_custom_call.1} parent=1 // pred_check
      _
    $region51: #{tpu_custom_call.1} parent=1 // pred_check_branch
      %129 = sbr.rel (0) target = $region53
    $region52: #{tpu_custom_call.1} parent=1 // pred_region
      %131 = dma.done [#allocation9], 64
    $region53: #{tpu_custom_call.1} parent=1 // pred_fallthru
      _
    // Predicated region
    $region54: #{tpu_custom_call.1} parent=1 // pred_check
      _
    $region55: #{tpu_custom_call.1} parent=1 // pred_check_branch
      %133 = sbr.rel (0) target = $region57
    $region56: #{tpu_custom_call.1} parent=1 // pred_region
      %135 = dma.done [#allocation9], 24576
    $region57: #{tpu_custom_call.1} parent=1 // pred_fallthru
      _
    // Predicated region
    $region58: #{tpu_custom_call.1} parent=1 // pred_check
      _
    $region59: #{tpu_custom_call.1} parent=1 // pred_check_branch
      %137 = sbr.rel (0) target = $region61
    $region60: #{tpu_custom_call.1} parent=1 // pred_region
      %139 = dma.done [#allocation12], 96
    $region61: #{tpu_custom_call.1} parent=1 // pred_fallthru
      _
    // Predicated region
    $region62: #{tpu_custom_call.1} parent=1 // pred_check
      _
    $region63: #{tpu_custom_call.1} parent=1 // pred_check_branch
      %141 = sbr.rel (0) target = $region65
    $region64: #{tpu_custom_call.1} parent=1 // pred_region
      %143 = dma.done [#allocation12], 96
    $region65: #{tpu_custom_call.1} parent=1 // pred_fallthru
      _
    // Predicated region
    $region66: #{tpu_custom_call.1} parent=1 // pred_check
      _
    $region67: #{tpu_custom_call.1} parent=1 // pred_check_branch
      %145 = sbr.rel (0) target = $region69
    $region68: #{tpu_custom_call.1} parent=1 // pred_region
      %147 = dma.done [#allocation15], 6144
    $region69: #{tpu_custom_call.1} parent=1 // pred_fallthru
      _
    %v148 = vld [vmem:[#allocation2] sm:$0xf]
    %v149 = vmax.f32 %v148, 0.0
    %151 = vst [vmem:[#allocation1] ss:$4 sm:$0xff] %v149
    %v152 = vld.sshfl [vmem:[#allocation1] sm:$0xff pattern:$0x73625140]
    %v153 = vld.sshfl [vmem:[#allocation1 + $0x8] sm:$0xff pattern:$0x73625140]
    %v156 = vpack.c.bf16 %v152, %v152
    %v157 = vpack.c.bf16 %v153, %v153
    %v158 = vld [vmem:[#allocation5] sm:$0xff]
    %v159 = vld [vmem:[#allocation5 + $0x8] sm:$0xff]
    %v160 = vld [vmem:[#allocation5 + $0x10] sm:$0xff]
    %v161 = vld [vmem:[#allocation5 + $0x18] sm:$0xff]
    %v162 = vld [vmem:[#allocation5 + $0x20] sm:$0xff]
    %v163 = vld [vmem:[#allocation5 + $0x28] sm:$0xff]
    %v164 = vld [vmem:[#allocation5 + $0x30] sm:$0xff]
    %v165 = vld [vmem:[#allocation5 + $0x38] sm:$0xff]
    %v166 = vld [vmem:[#allocation5 + $0x40] sm:$0xff]
    %v167 = vld [vmem:[#allocation5 + $0x48] sm:$0xff]
    %v168 = vld [vmem:[#allocation5 + $0x50] sm:$0xff]
    %v169 = vld [vmem:[#allocation5 + $0x58] sm:$0xff]
    %v170 = vld [vmem:[#allocation5 + $0x60] sm:$0xff]
    %v171 = vld [vmem:[#allocation5 + $0x68] sm:$0xff]
    %v172 = vld [vmem:[#allocation5 + $0x70] sm:$0xff]
    %v173 = vld [vmem:[#allocation5 + $0x78] sm:$0xff]
    %v174 = vld [vmem:[#allocation5 + $0x80] sm:$0xff]
    %v175 = vld [vmem:[#allocation5 + $0x88] sm:$0xff]
    %v176 = vld [vmem:[#allocation5 + $0x90] sm:$0xff]
    %v177 = vld [vmem:[#allocation5 + $0x98] sm:$0xff]
    %v178 = vld [vmem:[#allocation5 + $0xa0] sm:$0xff]
    %v179 = vld [vmem:[#allocation5 + $0xa8] sm:$0xff]
    %v180 = vld [vmem:[#allocation5 + $0xb0] sm:$0xff]
    %v181 = vld [vmem:[#allocation5 + $0xb8] sm:$0xff]
    %v182 = vld [vmem:[#allocation5 + $0xc0] sm:$0xff]
    %v183 = vld [vmem:[#allocation5 + $0xc8] sm:$0xff]
    %v184 = vld [vmem:[#allocation5 + $0xd0] sm:$0xff]
    %v185 = vld [vmem:[#allocation5 + $0xd8] sm:$0xff]
    %v186 = vld [vmem:[#allocation5 + $0xe0] sm:$0xff]
    %v187 = vld [vmem:[#allocation5 + $0xe8] sm:$0xff]
    %v188 = vld [vmem:[#allocation5 + $0xf0] sm:$0xff]
    %v189 = vld [vmem:[#allocation5 + $0xf8] sm:$0xff]
    %v190 = vld [vmem:[#allocation5 + $0x100] sm:$0xff]
    %v191 = vld [vmem:[#allocation5 + $0x108] sm:$0xff]
    %v192 = vld [vmem:[#allocation5 + $0x110] sm:$0xff]
    %v193 = vld [vmem:[#allocation5 + $0x118] sm:$0xff]
    %v194 = vld [vmem:[#allocation5 + $0x120] sm:$0xff]
    %v195 = vld [vmem:[#allocation5 + $0x128] sm:$0xff]
    %v196 = vld [vmem:[#allocation5 + $0x130] sm:$0xff]
    %v197 = vld [vmem:[#allocation5 + $0x138] sm:$0xff]
    %v198 = vld [vmem:[#allocation5 + $0x140] sm:$0xff]
    %v199 = vld [vmem:[#allocation5 + $0x148] sm:$0xff]
    %v200 = vld [vmem:[#allocation5 + $0x150] sm:$0xff]
    %v201 = vld [vmem:[#allocation5 + $0x158] sm:$0xff]
    %v202 = vld [vmem:[#allocation5 + $0x160] sm:$0xff]
    %v203 = vld [vmem:[#allocation5 + $0x168] sm:$0xff]
    %v204 = vld [vmem:[#allocation5 + $0x170] sm:$0xff]
    %v205 = vld [vmem:[#allocation5 + $0x178] sm:$0xff]
    %v206 = vld [vmem:[#allocation5 + $0x180] sm:$0xff]
    %v207 = vld [vmem:[#allocation5 + $0x188] sm:$0xff]
    %v208 = vld [vmem:[#allocation5 + $0x190] sm:$0xff]
    %v209 = vld [vmem:[#allocation5 + $0x198] sm:$0xff]
    %v210 = vld [vmem:[#allocation5 + $0x1a0] sm:$0xff]
    %v211 = vld [vmem:[#allocation5 + $0x1a8] sm:$0xff]
    %v212 = vld [vmem:[#allocation5 + $0x1b0] sm:$0xff]
    %v213 = vld [vmem:[#allocation5 + $0x1b8] sm:$0xff]
    %v214 = vld [vmem:[#allocation5 + $0x1c0] sm:$0xff]
    %v215 = vld [vmem:[#allocation5 + $0x1c8] sm:$0xff]
    %v216 = vld [vmem:[#allocation5 + $0x1d0] sm:$0xff]
    %v217 = vld [vmem:[#allocation5 + $0x1d8] sm:$0xff]
    %v218 = vld [vmem:[#allocation5 + $0x1e0] sm:$0xff]
    %v219 = vld [vmem:[#allocation5 + $0x1e8] sm:$0xff]
    %v220 = vld [vmem:[#allocation5 + $0x1f0] sm:$0xff]
    %v221 = vld [vmem:[#allocation5 + $0x1f8] sm:$0xff]
    %v286 = vunpack.c.l.b16 %v158
    %v287 = vunpack.c.h.b16 %v158
    %v288 = vunpack.c.l.b16 %v159
    %v289 = vunpack.c.h.b16 %v159
    %v290 = vunpack.c.l.b16 %v160
    %v291 = vunpack.c.h.b16 %v160
    %v292 = vunpack.c.l.b16 %v161
    %v293 = vunpack.c.h.b16 %v161
    %v294 = vunpack.c.l.b16 %v162
    %v295 = vunpack.c.h.b16 %v162
    %v296 = vunpack.c.l.b16 %v163
    %v297 = vunpack.c.h.b16 %v163
    %v298 = vunpack.c.l.b16 %v164
    %v299 = vunpack.c.h.b16 %v164
    %v300 = vunpack.c.l.b16 %v165
    %v301 = vunpack.c.h.b16 %v165
    %v302 = vunpack.c.l.b16 %v166
    %v303 = vunpack.c.h.b16 %v166
    %v304 = vunpack.c.l.b16 %v167
    %v305 = vunpack.c.h.b16 %v167
    %v306 = vunpack.c.l.b16 %v168
    %v307 = vunpack.c.h.b16 %v168
    %v308 = vunpack.c.l.b16 %v169
    %v309 = vunpack.c.h.b16 %v169
    %v310 = vunpack.c.l.b16 %v170
    %v311 = vunpack.c.h.b16 %v170
    %v312 = vunpack.c.l.b16 %v171
    %v313 = vunpack.c.h.b16 %v171
    %v314 = vunpack.c.l.b16 %v172
    %v315 = vunpack.c.h.b16 %v172
    %v316 = vunpack.c.l.b16 %v173
    %v317 = vunpack.c.h.b16 %v173
    %v318 = vunpack.c.l.b16 %v174
    %v319 = vunpack.c.h.b16 %v174
    %v320 = vunpack.c.l.b16 %v175
    %v321 = vunpack.c.h.b16 %v175
    %v322 = vunpack.c.l.b16 %v176
    %v323 = vunpack.c.h.b16 %v176
    %v324 = vunpack.c.l.b16 %v177
    %v325 = vunpack.c.h.b16 %v177
    %v326 = vunpack.c.l.b16 %v178
    %v327 = vunpack.c.h.b16 %v178
    %v328 = vunpack.c.l.b16 %v179
    %v329 = vunpack.c.h.b16 %v179
    %v330 = vunpack.c.l.b16 %v180
    %v331 = vunpack.c.h.b16 %v180
    %v332 = vunpack.c.l.b16 %v181
    %v333 = vunpack.c.h.b16 %v181
    %v334 = vunpack.c.l.b16 %v182
    %v335 = vunpack.c.h.b16 %v182
    %v336 = vunpack.c.l.b16 %v183
    %v337 = vunpack.c.h.b16 %v183
    %v338 = vunpack.c.l.b16 %v184
    %v339 = vunpack.c.h.b16 %v184
    %v340 = vunpack.c.l.b16 %v185
    %v341 = vunpack.c.h.b16 %v185
    %v342 = vunpack.c.l.b16 %v186
    %v343 = vunpack.c.h.b16 %v186
    %v344 = vunpack.c.l.b16 %v187
    %v345 = vunpack.c.h.b16 %v187
    %v346 = vunpack.c.l.b16 %v188
    %v347 = vunpack.c.h.b16 %v188
    %v348 = vunpack.c.l.b16 %v189
    %v349 = vunpack.c.h.b16 %v189
    %v350 = vunpack.c.l.b16 %v190
    %v351 = vunpack.c.h.b16 %v190
    %v352 = vunpack.c.l.b16 %v191
    %v353 = vunpack.c.h.b16 %v191
    %v354 = vunpack.c.l.b16 %v192
    %v355 = vunpack.c.h.b16 %v192
    %v356 = vunpack.c.l.b16 %v193
    %v357 = vunpack.c.h.b16 %v193
    %v358 = vunpack.c.l.b16 %v194
    %v359 = vunpack.c.h.b16 %v194
    %v360 = vunpack.c.l.b16 %v195
    %v361 = vunpack.c.h.b16 %v195
    %v362 = vunpack.c.l.b16 %v196
    %v363 = vunpack.c.h.b16 %v196
    %v364 = vunpack.c.l.b16 %v197
    %v365 = vunpack.c.h.b16 %v197
    %v366 = vunpack.c.l.b16 %v198
    %v367 = vunpack.c.h.b16 %v198
    %v368 = vunpack.c.l.b16 %v199
    %v369 = vunpack.c.h.b16 %v199
    %v370 = vunpack.c.l.b16 %v200
    %v371 = vunpack.c.h.b16 %v200
    %v372 = vunpack.c.l.b16 %v201
    %v373 = vunpack.c.h.b16 %v201
    %v374 = vunpack.c.l.b16 %v202
    %v375 = vunpack.c.h.b16 %v202
    %v376 = vunpack.c.l.b16 %v203
    %v377 = vunpack.c.h.b16 %v203
    %v378 = vunpack.c.l.b16 %v204
    %v379 = vunpack.c.h.b16 %v204
    %v380 = vunpack.c.l.b16 %v205
    %v381 = vunpack.c.h.b16 %v205
    %v382 = vunpack.c.l.b16 %v206
    %v383 = vunpack.c.h.b16 %v206
    %v384 = vunpack.c.l.b16 %v207
    %v385 = vunpack.c.h.b16 %v207
    %v386 = vunpack.c.l.b16 %v208
    %v387 = vunpack.c.h.b16 %v208
    %v388 = vunpack.c.l.b16 %v209
    %v389 = vunpack.c.h.b16 %v209
    %v390 = vunpack.c.l.b16 %v210
    %v391 = vunpack.c.h.b16 %v210
    %v392 = vunpack.c.l.b16 %v211
    %v393 = vunpack.c.h.b16 %v211
    %v394 = vunpack.c.l.b16 %v212
    %v395 = vunpack.c.h.b16 %v212
    %v396 = vunpack.c.l.b16 %v213
    %v397 = vunpack.c.h.b16 %v213
    %v398 = vunpack.c.l.b16 %v214
    %v399 = vunpack.c.h.b16 %v214
    %v400 = vunpack.c.l.b16 %v215
    %v401 = vunpack.c.h.b16 %v215
    %v402 = vunpack.c.l.b16 %v216
    %v403 = vunpack.c.h.b16 %v216
    %v404 = vunpack.c.l.b16 %v217
    %v405 = vunpack.c.h.b16 %v217
    %v406 = vunpack.c.l.b16 %v218
    %v407 = vunpack.c.h.b16 %v218
    %v408 = vunpack.c.l.b16 %v219
    %v409 = vunpack.c.h.b16 %v219
    %v410 = vunpack.c.l.b16 %v220
    %v411 = vunpack.c.h.b16 %v220
    %v412 = vunpack.c.l.b16 %v221
    %v413 = vunpack.c.h.b16 %v221
    %v414 = vpack.c.b16 %v290, %v286
    %v415 = vpack.c.b16 %v291, %v287
    %v416 = vpack.c.b16 %v292, %v288
    %v417 = vpack.c.b16 %v293, %v289
    %v418 = vpack.c.b16 %v298, %v294
    %v419 = vpack.c.b16 %v299, %v295
    %v420 = vpack.c.b16 %v300, %v296
    %v421 = vpack.c.b16 %v301, %v297
    %v422 = vpack.c.b16 %v306, %v302
    %v423 = vpack.c.b16 %v307, %v303
    %v424 = vpack.c.b16 %v308, %v304
    %v425 = vpack.c.b16 %v309, %v305
    %v426 = vpack.c.b16 %v314, %v310
    %v427 = vpack.c.b16 %v315, %v311
    %v428 = vpack.c.b16 %v316, %v312
    %v429 = vpack.c.b16 %v317, %v313
    %v430 = vpack.c.b16 %v322, %v318
    %v431 = vpack.c.b16 %v323, %v319
    %v432 = vpack.c.b16 %v324, %v320
    %v433 = vpack.c.b16 %v325, %v321
    %v434 = vpack.c.b16 %v330, %v326
    %v435 = vpack.c.b16 %v331, %v327
    %v436 = vpack.c.b16 %v332, %v328
    %v437 = vpack.c.b16 %v333, %v329
    %v438 = vpack.c.b16 %v338, %v334
    %v439 = vpack.c.b16 %v339, %v335
    %v440 = vpack.c.b16 %v340, %v336
    %v441 = vpack.c.b16 %v341, %v337
    %v442 = vpack.c.b16 %v346, %v342
    %v443 = vpack.c.b16 %v347, %v343
    %v444 = vpack.c.b16 %v348, %v344
    %v445 = vpack.c.b16 %v349, %v345
    %v446 = vpack.c.b16 %v354, %v350
    %v447 = vpack.c.b16 %v355, %v351
    %v448 = vpack.c.b16 %v356, %v352
    %v449 = vpack.c.b16 %v357, %v353
    %v450 = vpack.c.b16 %v362, %v358
    %v451 = vpack.c.b16 %v363, %v359
    %v452 = vpack.c.b16 %v364, %v360
    %v453 = vpack.c.b16 %v365, %v361
    %v454 = vpack.c.b16 %v370, %v366
    %v455 = vpack.c.b16 %v371, %v367
    %v456 = vpack.c.b16 %v372, %v368
    %v457 = vpack.c.b16 %v373, %v369
    %v458 = vpack.c.b16 %v378, %v374
    %v459 = vpack.c.b16 %v379, %v375
    %v460 = vpack.c.b16 %v380, %v376
    %v461 = vpack.c.b16 %v381, %v377
    %v462 = vpack.c.b16 %v386, %v382
    %v463 = vpack.c.b16 %v387, %v383
    %v464 = vpack.c.b16 %v388, %v384
    %v465 = vpack.c.b16 %v389, %v385
    %v466 = vpack.c.b16 %v394, %v390
    %v467 = vpack.c.b16 %v395, %v391
    %v468 = vpack.c.b16 %v396, %v392
    %v469 = vpack.c.b16 %v397, %v393
    %v470 = vpack.c.b16 %v402, %v398
    %v471 = vpack.c.b16 %v403, %v399
    %v472 = vpack.c.b16 %v404, %v400
    %v473 = vpack.c.b16 %v405, %v401
    %v474 = vpack.c.b16 %v410, %v406
    %v475 = vpack.c.b16 %v411, %v407
    %v476 = vpack.c.b16 %v412, %v408
    %v477 = vpack.c.b16 %v413, %v409
    %542 = vmatpush.bf16.msra.mxu0 %v442
    %543 = vmatpush.bf16.msra.mxu0 %v438
    %544 = vmatpush.bf16.msra.mxu0 %v434
    %545 = vmatpush.bf16.msra.mxu0 %v430
    %546 = vmatpush.bf16.msra.mxu0 %v426
    %547 = vmatpush.bf16.msra.mxu0 %v422
    %548 = vmatpush.bf16.msra.mxu0 %v418
    %549 = vmatpush.bf16.msra.mxu0 %v414
    %550 = vmatmul.bf16.gmra.mxu0 %v156
    %v551 = vpop.f32.mrf.mxu0
    %v552 = vadd.f32 0.0, %v551
    %v553 = vpop.f32.mrf.mxu0
    %554 = vdwg.mxu0
    %555 = vmatpush.bf16.msra.mxu0 %v474
    %556 = vmatpush.bf16.msra.mxu0 %v470
    %557 = vmatpush.bf16.msra.mxu0 %v466
    %558 = vmatpush.bf16.msra.mxu0 %v462
    %559 = vmatpush.bf16.msra.mxu0 %v458
    %560 = vmatpush.bf16.msra.mxu0 %v454
    %561 = vmatpush.bf16.msra.mxu0 %v450
    %562 = vmatpush.bf16.msra.mxu0 %v446
    %563 = vmatmul.bf16.gmra.mxu0 %v157
    %v564 = vpop.f32.mrf.mxu0
    %v565 = vadd.f32 %v552, %v564
    %v566 = vpop.f32.mrf.mxu0
    %567 = vdwg.mxu0
    %568 = vmatpush.bf16.msra.mxu0 %v443
    %569 = vmatpush.bf16.msra.mxu0 %v439
    %570 = vmatpush.bf16.msra.mxu0 %v435
    %571 = vmatpush.bf16.msra.mxu0 %v431
    %572 = vmatpush.bf16.msra.mxu0 %v427
    %573 = vmatpush.bf16.msra.mxu0 %v423
    %574 = vmatpush.bf16.msra.mxu0 %v419
    %575 = vmatpush.bf16.msra.mxu0 %v415
    %576 = vmatmul.bf16.gmra.mxu0 %v156
    %v577 = vpop.f32.mrf.mxu0
    %v578 = vadd.f32 0.0, %v577
    %v579 = vpop.f32.mrf.mxu0
    %580 = vdwg.mxu0
    %581 = vmatpush.bf16.msra.mxu0 %v475
    %582 = vmatpush.bf16.msra.mxu0 %v471
    %583 = vmatpush.bf16.msra.mxu0 %v467
    %584 = vmatpush.bf16.msra.mxu0 %v463
    %585 = vmatpush.bf16.msra.mxu0 %v459
    %586 = vmatpush.bf16.msra.mxu0 %v455
    %587 = vmatpush.bf16.msra.mxu0 %v451
    %588 = vmatpush.bf16.msra.mxu0 %v447
    %589 = vmatmul.bf16.gmra.mxu0 %v157
    %v590 = vpop.f32.mrf.mxu0
    %v591 = vadd.f32 %v578, %v590
    %v592 = vpop.f32.mrf.mxu0
    %593 = vdwg.mxu0
    %594 = vmatpush.bf16.msra.mxu0 %v444
    %595 = vmatpush.bf16.msra.mxu0 %v440
    %596 = vmatpush.bf16.msra.mxu0 %v436
    %597 = vmatpush.bf16.msra.mxu0 %v432
    %598 = vmatpush.bf16.msra.mxu0 %v428
    %599 = vmatpush.bf16.msra.mxu0 %v424
    %600 = vmatpush.bf16.msra.mxu0 %v420
    %601 = vmatpush.bf16.msra.mxu0 %v416
    %602 = vmatmul.bf16.gmra.mxu0 %v156
    %v603 = vpop.f32.mrf.mxu0
    %v604 = vadd.f32 0.0, %v603
    %v605 = vpop.f32.mrf.mxu0
    %606 = vdwg.mxu0
    %607 = vmatpush.bf16.msra.mxu0 %v476
    %608 = vmatpush.bf16.msra.mxu0 %v472
    %609 = vmatpush.bf16.msra.mxu0 %v468
    %610 = vmatpush.bf16.msra.mxu0 %v464
    %611 = vmatpush.bf16.msra.mxu0 %v460
    %612 = vmatpush.bf16.msra.mxu0 %v456
    %613 = vmatpush.bf16.msra.mxu0 %v452
    %614 = vmatpush.bf16.msra.mxu0 %v448
    %615 = vmatmul.bf16.gmra.mxu0 %v157
    %v616 = vpop.f32.mrf.mxu0
    %v617 = vadd.f32 %v604, %v616
    %v618 = vpop.f32.mrf.mxu0
    %619 = vdwg.mxu0
    %620 = vmatpush.bf16.msra.mxu0 %v445
    %621 = vmatpush.bf16.msra.mxu0 %v441
    %622 = vmatpush.bf16.msra.mxu0 %v437
    %623 = vmatpush.bf16.msra.mxu0 %v433
    %624 = vmatpush.bf16.msra.mxu0 %v429
    %625 = vmatpush.bf16.msra.mxu0 %v425
    %626 = vmatpush.bf16.msra.mxu0 %v421
    %627 = vmatpush.bf16.msra.mxu0 %v417
    %628 = vmatmul.bf16.gmra.mxu0 %v156
    %v629 = vpop.f32.mrf.mxu0
    %v630 = vadd.f32 0.0, %v629
    %v631 = vpop.f32.mrf.mxu0
    %632 = vdwg.mxu0
    %633 = vmatpush.bf16.msra.mxu0 %v477
    %634 = vmatpush.bf16.msra.mxu0 %v473
    %635 = vmatpush.bf16.msra.mxu0 %v469
    %636 = vmatpush.bf16.msra.mxu0 %v465
    %637 = vmatpush.bf16.msra.mxu0 %v461
    %638 = vmatpush.bf16.msra.mxu0 %v457
    %639 = vmatpush.bf16.msra.mxu0 %v453
    %640 = vmatpush.bf16.msra.mxu0 %v449
    %641 = vmatmul.bf16.gmra.mxu0 %v157
    %v642 = vpop.f32.mrf.mxu0
    %v643 = vadd.f32 %v630, %v642
    %v644 = vpop.f32.mrf.mxu0
    %645 = vdwg.mxu0
    %v646 = vld [vmem:[#allocation7] sm:$0xf]
    %v648 = vperm.slane %v646, 0
    %v649 = vperm.slane %v646, 1
    %v650 = vperm.slane %v646, 2
    %v651 = vperm.slane %v646, 3
    %v656 = vmul.f32 %v565, %v648
    %v657 = vmul.f32 %v591, %v649
    %v658 = vmul.f32 %v617, %v650
    %v659 = vmul.f32 %v643, %v651
    %v660 = vld [vmem:[#allocation8] sm:$0xf]
    %v662 = vperm.slane %v660, 0
    %v663 = vperm.slane %v660, 1
    %v664 = vperm.slane %v660, 2
    %v665 = vperm.slane %v660, 3
    %v670 = vadd.f32 %v656, %v662
    %v671 = vadd.f32 %v657, %v663
    %v672 = vadd.f32 %v658, %v664
    %v673 = vadd.f32 %v659, %v665
    %v674 = vmax.f32 %v670, 0.0
    %v675 = vmax.f32 %v671, 0.0
    %v676 = vmax.f32 %v672, 0.0
    %v677 = vmax.f32 %v673, 0.0
    %v678 = vpack.c.bf16 %v674, %v674
    %v679 = vpack.c.bf16 %v675, %v675
    %v680 = vpack.c.bf16 %v676, %v676
    %v681 = vpack.c.bf16 %v677, %v677
    %v682 = vld [vmem:[#allocation10] sm:$0xff]
    %v683 = vld [vmem:[#allocation10 + $0x8] sm:$0xff]
    %v684 = vld [vmem:[#allocation10 + $0x10] sm:$0xff]
    %v685 = vld [vmem:[#allocation10 + $0x18] sm:$0xff]
    %v686 = vld [vmem:[#allocation10 + $0x20] sm:$0xff]
    %v687 = vld [vmem:[#allocation10 + $0x28] sm:$0xff]
    %v688 = vld [vmem:[#allocation10 + $0x30] sm:$0xff]
    %v689 = vld [vmem:[#allocation10 + $0x38] sm:$0xff]
    %v690 = vld [vmem:[#allocation10 + $0x40] sm:$0xff]
    %v691 = vld [vmem:[#allocation10 + $0x48] sm:$0xff]
    %v692 = vld [vmem:[#allocation10 + $0x50] sm:$0xff]
    %v693 = vld [vmem:[#allocation10 + $0x58] sm:$0xff]
    %v694 = vld [vmem:[#allocation10 + $0x60] sm:$0xff]
    %v695 = vld [vmem:[#allocation10 + $0x68] sm:$0xff]
    %v696 = vld [vmem:[#allocation10 + $0x70] sm:$0xff]
    %v697 = vld [vmem:[#allocation10 + $0x78] sm:$0xff]
    %v698 = vld [vmem:[#allocation10 + $0x80] sm:$0xff]
    %v699 = vld [vmem:[#allocation10 + $0x88] sm:$0xff]
    %v700 = vld [vmem:[#allocation10 + $0x90] sm:$0xff]
    %v701 = vld [vmem:[#allocation10 + $0x98] sm:$0xff]
    %v702 = vld [vmem:[#allocation10 + $0xa0] sm:$0xff]
    %v703 = vld [vmem:[#allocation10 + $0xa8] sm:$0xff]
    %v704 = vld [vmem:[#allocation10 + $0xb0] sm:$0xff]
    %v705 = vld [vmem:[#allocation10 + $0xb8] sm:$0xff]
    %v706 = vld [vmem:[#allocation10 + $0xc0] sm:$0xff]
    %v707 = vld [vmem:[#allocation10 + $0xc8] sm:$0xff]
    %v708 = vld [vmem:[#allocation10 + $0xd0] sm:$0xff]
    %v709 = vld [vmem:[#allocation10 + $0xd8] sm:$0xff]
    %v710 = vld [vmem:[#allocation10 + $0xe0] sm:$0xff]
    %v711 = vld [vmem:[#allocation10 + $0xe8] sm:$0xff]
    %v712 = vld [vmem:[#allocation10 + $0xf0] sm:$0xff]
    %v713 = vld [vmem:[#allocation10 + $0xf8] sm:$0xff]
    %v714 = vld [vmem:[#allocation10 + $0x100] sm:$0xff]
    %v715 = vld [vmem:[#allocation10 + $0x108] sm:$0xff]
    %v716 = vld [vmem:[#allocation10 + $0x110] sm:$0xff]
    %v717 = vld [vmem:[#allocation10 + $0x118] sm:$0xff]
    %v718 = vld [vmem:[#allocation10 + $0x120] sm:$0xff]
    %v719 = vld [vmem:[#allocation10 + $0x128] sm:$0xff]
    %v720 = vld [vmem:[#allocation10 + $0x130] sm:$0xff]
    %v721 = vld [vmem:[#allocation10 + $0x138] sm:$0xff]
    %v722 = vld [vmem:[#allocation10 + $0x140] sm:$0xff]
    %v723 = vld [vmem:[#allocation10 + $0x148] sm:$0xff]
    %v724 = vld [vmem:[#allocation10 + $0x150] sm:$0xff]
    %v725 = vld [vmem:[#allocation10 + $0x158] sm:$0xff]
    %v726 = vld [vmem:[#allocation10 + $0x160] sm:$0xff]
    %v727 = vld [vmem:[#allocation10 + $0x168] sm:$0xff]
    %v728 = vld [vmem:[#allocation10 + $0x170] sm:$0xff]
    %v729 = vld [vmem:[#allocation10 + $0x178] sm:$0xff]
    %v730 = vld [vmem:[#allocation10 + $0x180] sm:$0xff]
    %v731 = vld [vmem:[#allocation10 + $0x188] sm:$0xff]
    %v732 = vld [vmem:[#allocation10 + $0x190] sm:$0xff]
    %v733 = vld [vmem:[#allocation10 + $0x198] sm:$0xff]
    %v734 = vld [vmem:[#allocation10 + $0x1a0] sm:$0xff]
    %v735 = vld [vmem:[#allocation10 + $0x1a8] sm:$0xff]
    %v736 = vld [vmem:[#allocation10 + $0x1b0] sm:$0xff]
    %v737 = vld [vmem:[#allocation10 + $0x1b8] sm:$0xff]
    %v738 = vld [vmem:[#allocation10 + $0x1c0] sm:$0xff]
    %v739 = vld [vmem:[#allocation10 + $0x1c8] sm:$0xff]
    %v740 = vld [vmem:[#allocation10 + $0x1d0] sm:$0xff]
    %v741 = vld [vmem:[#allocation10 + $0x1d8] sm:$0xff]
    %v742 = vld [vmem:[#allocation10 + $0x1e0] sm:$0xff]
    %v743 = vld [vmem:[#allocation10 + $0x1e8] sm:$0xff]
    %v744 = vld [vmem:[#allocation10 + $0x1f0] sm:$0xff]
    %v745 = vld [vmem:[#allocation10 + $0x1f8] sm:$0xff]
    %v746 = vld [vmem:[#allocation10 + $0x200] sm:$0xff]
    %v747 = vld [vmem:[#allocation10 + $0x208] sm:$0xff]
    %v748 = vld [vmem:[#allocation10 + $0x210] sm:$0xff]
    %v749 = vld [vmem:[#allocation10 + $0x218] sm:$0xff]
    %v750 = vld [vmem:[#allocation10 + $0x220] sm:$0xff]
    %v751 = vld [vmem:[#allocation10 + $0x228] sm:$0xff]
    %v752 = vld [vmem:[#allocation10 + $0x230] sm:$0xff]
    %v753 = vld [vmem:[#allocation10 + $0x238] sm:$0xff]
    %v754 = vld [vmem:[#allocation10 + $0x240] sm:$0xff]
    %v755 = vld [vmem:[#allocation10 + $0x248] sm:$0xff]
    %v756 = vld [vmem:[#allocation10 + $0x250] sm:$0xff]
    %v757 = vld [vmem:[#allocation10 + $0x258] sm:$0xff]
    %v758 = vld [vmem:[#allocation10 + $0x260] sm:$0xff]
    %v759 = vld [vmem:[#allocation10 + $0x268] sm:$0xff]
    %v760 = vld [vmem:[#allocation10 + $0x270] sm:$0xff]
    %v761 = vld [vmem:[#allocation10 + $0x278] sm:$0xff]
    %v762 = vld [vmem:[#allocation10 + $0x280] sm:$0xff]
    %v763 = vld [vmem:[#allocation10 + $0x288] sm:$0xff]
    %v764 = vld [vmem:[#allocation10 + $0x290] sm:$0xff]
    %v765 = vld [vmem:[#allocation10 + $0x298] sm:$0xff]
    %v766 = vld [vmem:[#allocation10 + $0x2a0] sm:$0xff]
    %v767 = vld [vmem:[#allocation10 + $0x2a8] sm:$0xff]
    %v768 = vld [vmem:[#allocation10 + $0x2b0] sm:$0xff]
    %v769 = vld [vmem:[#allocation10 + $0x2b8] sm:$0xff]
    %v770 = vld [vmem:[#allocation10 + $0x2c0] sm:$0xff]
    %v771 = vld [vmem:[#allocation10 + $0x2c8] sm:$0xff]
    %v772 = vld [vmem:[#allocation10 + $0x2d0] sm:$0xff]
    %v773 = vld [vmem:[#allocation10 + $0x2d8] sm:$0xff]
    %v774 = vld [vmem:[#allocation10 + $0x2e0] sm:$0xff]
    %v775 = vld [vmem:[#allocation10 + $0x2e8] sm:$0xff]
    %v776 = vld [vmem:[#allocation10 + $0x2f0] sm:$0xff]
    %v777 = vld [vmem:[#allocation10 + $0x2f8] sm:$0xff]
    %v778 = vld [vmem:[#allocation10 + $0x300] sm:$0xff]
    %v779 = vld [vmem:[#allocation10 + $0x308] sm:$0xff]
    %v780 = vld [vmem:[#allocation10 + $0x310] sm:$0xff]
    %v781 = vld [vmem:[#allocation10 + $0x318] sm:$0xff]
    %v782 = vld [vmem:[#allocation10 + $0x320] sm:$0xff]
    %v783 = vld [vmem:[#allocation10 + $0x328] sm:$0xff]
    %v784 = vld [vmem:[#allocation10 + $0x330] sm:$0xff]
    %v785 = vld [vmem:[#allocation10 + $0x338] sm:$0xff]
    %v786 = vld [vmem:[#allocation10 + $0x340] sm:$0xff]
    %v787 = vld [vmem:[#allocation10 + $0x348] sm:$0xff]
    %v788 = vld [vmem:[#allocation10 + $0x350] sm:$0xff]
    %v789 = vld [vmem:[#allocation10 + $0x358] sm:$0xff]
    %v790 = vld [vmem:[#allocation10 + $0x360] sm:$0xff]
    %v791 = vld [vmem:[#allocation10 + $0x368] sm:$0xff]
    %v792 = vld [vmem:[#allocation10 + $0x370] sm:$0xff]
    %v793 = vld [vmem:[#allocation10 + $0x378] sm:$0xff]
    %v794 = vld [vmem:[#allocation10 + $0x380] sm:$0xff]
    %v795 = vld [vmem:[#allocation10 + $0x388] sm:$0xff]
    %v796 = vld [vmem:[#allocation10 + $0x390] sm:$0xff]
    %v797 = vld [vmem:[#allocation10 + $0x398] sm:$0xff]
    %v798 = vld [vmem:[#allocation10 + $0x3a0] sm:$0xff]
    %v799 = vld [vmem:[#allocation10 + $0x3a8] sm:$0xff]
    %v800 = vld [vmem:[#allocation10 + $0x3b0] sm:$0xff]
    %v801 = vld [vmem:[#allocation10 + $0x3b8] sm:$0xff]
    %v802 = vld [vmem:[#allocation10 + $0x3c0] sm:$0xff]
    %v803 = vld [vmem:[#allocation10 + $0x3c8] sm:$0xff]
    %v804 = vld [vmem:[#allocation10 + $0x3d0] sm:$0xff]
    %v805 = vld [vmem:[#allocation10 + $0x3d8] sm:$0xff]
    %v806 = vld [vmem:[#allocation10 + $0x3e0] sm:$0xff]
    %v807 = vld [vmem:[#allocation10 + $0x3e8] sm:$0xff]
    %v808 = vld [vmem:[#allocation10 + $0x3f0] sm:$0xff]
    %v809 = vld [vmem:[#allocation10 + $0x3f8] sm:$0xff]
    %v810 = vld [vmem:[#allocation10 + $0x400] sm:$0xff]
    %v811 = vld [vmem:[#allocation10 + $0x408] sm:$0xff]
    %v812 = vld [vmem:[#allocation10 + $0x410] sm:$0xff]
    %v813 = vld [vmem:[#allocation10 + $0x418] sm:$0xff]
    %v814 = vld [vmem:[#allocation10 + $0x420] sm:$0xff]
    %v815 = vld [vmem:[#allocation10 + $0x428] sm:$0xff]
    %v816 = vld [vmem:[#allocation10 + $0x430] sm:$0xff]
    %v817 = vld [vmem:[#allocation10 + $0x438] sm:$0xff]
    %v818 = vld [vmem:[#allocation10 + $0x440] sm:$0xff]
    %v819 = vld [vmem:[#allocation10 + $0x448] sm:$0xff]
    %v820 = vld [vmem:[#allocation10 + $0x450] sm:$0xff]
    %v821 = vld [vmem:[#allocation10 + $0x458] sm:$0xff]
    %v822 = vld [vmem:[#allocation10 + $0x460] sm:$0xff]
    %v823 = vld [vmem:[#allocation10 + $0x468] sm:$0xff]
    %v824 = vld [vmem:[#allocation10 + $0x470] sm:$0xff]
    %v825 = vld [vmem:[#allocation10 + $0x478] sm:$0xff]
    %v826 = vld [vmem:[#allocation10 + $0x480] sm:$0xff]
    %v827 = vld [vmem:[#allocation10 + $0x488] sm:$0xff]
    %v828 = vld [vmem:[#allocation10 + $0x490] sm:$0xff]
    %v829 = vld [vmem:[#allocation10 + $0x498] sm:$0xff]
    %v830 = vld [vmem:[#allocation10 + $0x4a0] sm:$0xff]
    %v831 = vld [vmem:[#allocation10 + $0x4a8] sm:$0xff]
    %v832 = vld [vmem:[#allocation10 + $0x4b0] sm:$0xff]
    %v833 = vld [vmem:[#allocation10 + $0x4b8] sm:$0xff]
    %v834 = vld [vmem:[#allocation10 + $0x4c0] sm:$0xff]
    %v835 = vld [vmem:[#allocation10 + $0x4c8] sm:$0xff]
    %v836 = vld [vmem:[#allocation10 + $0x4d0] sm:$0xff]
    %v837 = vld [vmem:[#allocation10 + $0x4d8] sm:$0xff]
    %v838 = vld [vmem:[#allocation10 + $0x4e0] sm:$0xff]
    %v839 = vld [vmem:[#allocation10 + $0x4e8] sm:$0xff]
    %v840 = vld [vmem:[#allocation10 + $0x4f0] sm:$0xff]
    %v841 = vld [vmem:[#allocation10 + $0x4f8] sm:$0xff]
    %v842 = vld [vmem:[#allocation10 + $0x500] sm:$0xff]
    %v843 = vld [vmem:[#allocation10 + $0x508] sm:$0xff]
    %v844 = vld [vmem:[#allocation10 + $0x510] sm:$0xff]
    %v845 = vld [vmem:[#allocation10 + $0x518] sm:$0xff]
    %v846 = vld [vmem:[#allocation10 + $0x520] sm:$0xff]
    %v847 = vld [vmem:[#allocation10 + $0x528] sm:$0xff]
    %v848 = vld [vmem:[#allocation10 + $0x530] sm:$0xff]
    %v849 = vld [vmem:[#allocation10 + $0x538] sm:$0xff]
    %v850 = vld [vmem:[#allocation10 + $0x540] sm:$0xff]
    %v851 = vld [vmem:[#allocation10 + $0x548] sm:$0xff]
    %v852 = vld [vmem:[#allocation10 + $0x550] sm:$0xff]
    %v853 = vld [vmem:[#allocation10 + $0x558] sm:$0xff]
    %v854 = vld [vmem:[#allocation10 + $0x560] sm:$0xff]
    %v855 = vld [vmem:[#allocation10 + $0x568] sm:$0xff]
    %v856 = vld [vmem:[#allocation10 + $0x570] sm:$0xff]
    %v857 = vld [vmem:[#allocation10 + $0x578] sm:$0xff]
    %v858 = vld [vmem:[#allocation10 + $0x580] sm:$0xff]
    %v859 = vld [vmem:[#allocation10 + $0x588] sm:$0xff]
    %v860 = vld [vmem:[#allocation10 + $0x590] sm:$0xff]
    %v861 = vld [vmem:[#allocation10 + $0x598] sm:$0xff]
    %v862 = vld [vmem:[#allocation10 + $0x5a0] sm:$0xff]
    %v863 = vld [vmem:[#allocation10 + $0x5a8] sm:$0xff]
    %v864 = vld [vmem:[#allocation10 + $0x5b0] sm:$0xff]
    %v865 = vld [vmem:[#allocation10 + $0x5b8] sm:$0xff]
    %v866 = vld [vmem:[#allocation10 + $0x5c0] sm:$0xff]
    %v867 = vld [vmem:[#allocation10 + $0x5c8] sm:$0xff]
    %v868 = vld [vmem:[#allocation10 + $0x5d0] sm:$0xff]
    %v869 = vld [vmem:[#allocation10 + $0x5d8] sm:$0xff]
    %v870 = vld [vmem:[#allocation10 + $0x5e0] sm:$0xff]
    %v871 = vld [vmem:[#allocation10 + $0x5e8] sm:$0xff]
    %v872 = vld [vmem:[#allocation10 + $0x5f0] sm:$0xff]
    %v873 = vld [vmem:[#allocation10 + $0x5f8] sm:$0xff]
    %v1066 = vunpack.c.l.b16 %v682
    %v1067 = vunpack.c.h.b16 %v682
    %v1068 = vunpack.c.l.b16 %v683
    %v1069 = vunpack.c.h.b16 %v683
    %v1070 = vunpack.c.l.b16 %v684
    %v1071 = vunpack.c.h.b16 %v684
    %v1072 = vunpack.c.l.b16 %v685
    %v1073 = vunpack.c.h.b16 %v685
    %v1074 = vunpack.c.l.b16 %v686
    %v1075 = vunpack.c.h.b16 %v686
    %v1076 = vunpack.c.l.b16 %v687
    %v1077 = vunpack.c.h.b16 %v687
    %v1078 = vunpack.c.l.b16 %v688
    %v1079 = vunpack.c.h.b16 %v688
    %v1080 = vunpack.c.l.b16 %v689
    %v1081 = vunpack.c.h.b16 %v689
    %v1082 = vunpack.c.l.b16 %v690
    %v1083 = vunpack.c.h.b16 %v690
    %v1084 = vunpack.c.l.b16 %v691
    %v1085 = vunpack.c.h.b16 %v691
    %v1086 = vunpack.c.l.b16 %v692
    %v1087 = vunpack.c.h.b16 %v692
    %v1088 = vunpack.c.l.b16 %v693
    %v1089 = vunpack.c.h.b16 %v693
    %v1090 = vunpack.c.l.b16 %v694
    %v1091 = vunpack.c.h.b16 %v694
    %v1092 = vunpack.c.l.b16 %v695
    %v1093 = vunpack.c.h.b16 %v695
    %v1094 = vunpack.c.l.b16 %v696
    %v1095 = vunpack.c.h.b16 %v696
    %v1096 = vunpack.c.l.b16 %v697
    %v1097 = vunpack.c.h.b16 %v697
    %v1098 = vunpack.c.l.b16 %v698
    %v1099 = vunpack.c.h.b16 %v698
    %v1100 = vunpack.c.l.b16 %v699
    %v1101 = vunpack.c.h.b16 %v699
    %v1102 = vunpack.c.l.b16 %v700
    %v1103 = vunpack.c.h.b16 %v700
    %v1104 = vunpack.c.l.b16 %v701
    %v1105 = vunpack.c.h.b16 %v701
    %v1106 = vunpack.c.l.b16 %v702
    %v1107 = vunpack.c.h.b16 %v702
    %v1108 = vunpack.c.l.b16 %v703
    %v1109 = vunpack.c.h.b16 %v703
    %v1110 = vunpack.c.l.b16 %v704
    %v1111 = vunpack.c.h.b16 %v704
    %v1112 = vunpack.c.l.b16 %v705
    %v1113 = vunpack.c.h.b16 %v705
    %v1114 = vunpack.c.l.b16 %v706
    %v1115 = vunpack.c.h.b16 %v706
    %v1116 = vunpack.c.l.b16 %v707
    %v1117 = vunpack.c.h.b16 %v707
    %v1118 = vunpack.c.l.b16 %v708
    %v1119 = vunpack.c.h.b16 %v708
    %v1120 = vunpack.c.l.b16 %v709
    %v1121 = vunpack.c.h.b16 %v709
    %v1122 = vunpack.c.l.b16 %v710
    %v1123 = vunpack.c.h.b16 %v710
    %v1124 = vunpack.c.l.b16 %v711
    %v1125 = vunpack.c.h.b16 %v711
    %v1126 = vunpack.c.l.b16 %v712
    %v1127 = vunpack.c.h.b16 %v712
    %v1128 = vunpack.c.l.b16 %v713
    %v1129 = vunpack.c.h.b16 %v713
    %v1130 = vunpack.c.l.b16 %v714
    %v1131 = vunpack.c.h.b16 %v714
    %v1132 = vunpack.c.l.b16 %v715
    %v1133 = vunpack.c.h.b16 %v715
    %v1134 = vunpack.c.l.b16 %v716
    %v1135 = vunpack.c.h.b16 %v716
    %v1136 = vunpack.c.l.b16 %v717
    %v1137 = vunpack.c.h.b16 %v717
    %v1138 = vunpack.c.l.b16 %v718
    %v1139 = vunpack.c.h.b16 %v718
    %v1140 = vunpack.c.l.b16 %v719
    %v1141 = vunpack.c.h.b16 %v719
    %v1142 = vunpack.c.l.b16 %v720
    %v1143 = vunpack.c.h.b16 %v720
    %v1144 = vunpack.c.l.b16 %v721
    %v1145 = vunpack.c.h.b16 %v721
    %v1146 = vunpack.c.l.b16 %v722
    %v1147 = vunpack.c.h.b16 %v722
    %v1148 = vunpack.c.l.b16 %v723
    %v1149 = vunpack.c.h.b16 %v723
    %v1150 = vunpack.c.l.b16 %v724
    %v1151 = vunpack.c.h.b16 %v724
    %v1152 = vunpack.c.l.b16 %v725
    %v1153 = vunpack.c.h.b16 %v725
    %v1154 = vunpack.c.l.b16 %v726
    %v1155 = vunpack.c.h.b16 %v726
    %v1156 = vunpack.c.l.b16 %v727
    %v1157 = vunpack.c.h.b16 %v727
    %v1158 = vunpack.c.l.b16 %v728
    %v1159 = vunpack.c.h.b16 %v728
    %v1160 = vunpack.c.l.b16 %v729
    %v1161 = vunpack.c.h.b16 %v729
    %v1162 = vunpack.c.l.b16 %v730
    %v1163 = vunpack.c.h.b16 %v730
    %v1164 = vunpack.c.l.b16 %v731
    %v1165 = vunpack.c.h.b16 %v731
    %v1166 = vunpack.c.l.b16 %v732
    %v1167 = vunpack.c.h.b16 %v732
    %v1168 = vunpack.c.l.b16 %v733
    %v1169 = vunpack.c.h.b16 %v733
    %v1170 = vunpack.c.l.b16 %v734
    %v1171 = vunpack.c.h.b16 %v734
    %v1172 = vunpack.c.l.b16 %v735
    %v1173 = vunpack.c.h.b16 %v735
    %v1174 = vunpack.c.l.b16 %v736
    %v1175 = vunpack.c.h.b16 %v736
    %v1176 = vunpack.c.l.b16 %v737
    %v1177 = vunpack.c.h.b16 %v737
    %v1178 = vunpack.c.l.b16 %v738
    %v1179 = vunpack.c.h.b16 %v738
    %v1180 = vunpack.c.l.b16 %v739
    %v1181 = vunpack.c.h.b16 %v739
    %v1182 = vunpack.c.l.b16 %v740
    %v1183 = vunpack.c.h.b16 %v740
    %v1184 = vunpack.c.l.b16 %v741
    %v1185 = vunpack.c.h.b16 %v741
    %v1186 = vunpack.c.l.b16 %v742
    %v1187 = vunpack.c.h.b16 %v742
    %v1188 = vunpack.c.l.b16 %v743
    %v1189 = vunpack.c.h.b16 %v743
    %v1190 = vunpack.c.l.b16 %v744
    %v1191 = vunpack.c.h.b16 %v744
    %v1192 = vunpack.c.l.b16 %v745
    %v1193 = vunpack.c.h.b16 %v745
    %v1194 = vunpack.c.l.b16 %v746
    %v1195 = vunpack.c.h.b16 %v746
    %v1196 = vunpack.c.l.b16 %v747
    %v1197 = vunpack.c.h.b16 %v747
    %v1198 = vunpack.c.l.b16 %v748
    %v1199 = vunpack.c.h.b16 %v748
    %v1200 = vunpack.c.l.b16 %v749
    %v1201 = vunpack.c.h.b16 %v749
    %v1202 = vunpack.c.l.b16 %v750
    %v1203 = vunpack.c.h.b16 %v750
    %v1204 = vunpack.c.l.b16 %v751
    %v1205 = vunpack.c.h.b16 %v751
    %v1206 = vunpack.c.l.b16 %v752
    %v1207 = vunpack.c.h.b16 %v752
    %v1208 = vunpack.c.l.b16 %v753
    %v1209 = vunpack.c.h.b16 %v753
    %v1210 = vunpack.c.l.b16 %v754
    %v1211 = vunpack.c.h.b16 %v754
    %v1212 = vunpack.c.l.b16 %v755
    %v1213 = vunpack.c.h.b16 %v755
    %v1214 = vunpack.c.l.b16 %v756
    %v1215 = vunpack.c.h.b16 %v756
    %v1216 = vunpack.c.l.b16 %v757
    %v1217 = vunpack.c.h.b16 %v757
    %v1218 = vunpack.c.l.b16 %v758
    %v1219 = vunpack.c.h.b16 %v758
    %v1220 = vunpack.c.l.b16 %v759
    %v1221 = vunpack.c.h.b16 %v759
    %v1222 = vunpack.c.l.b16 %v760
    %v1223 = vunpack.c.h.b16 %v760
    %v1224 = vunpack.c.l.b16 %v761
    %v1225 = vunpack.c.h.b16 %v761
    %v1226 = vunpack.c.l.b16 %v762
    %v1227 = vunpack.c.h.b16 %v762
    %v1228 = vunpack.c.l.b16 %v763
    %v1229 = vunpack.c.h.b16 %v763
    %v1230 = vunpack.c.l.b16 %v764
    %v1231 = vunpack.c.h.b16 %v764
    %v1232 = vunpack.c.l.b16 %v765
    %v1233 = vunpack.c.h.b16 %v765
    %v1234 = vunpack.c.l.b16 %v766
    %v1235 = vunpack.c.h.b16 %v766
    %v1236 = vunpack.c.l.b16 %v767
    %v1237 = vunpack.c.h.b16 %v767
    %v1238 = vunpack.c.l.b16 %v768
    %v1239 = vunpack.c.h.b16 %v768
    %v1240 = vunpack.c.l.b16 %v769
    %v1241 = vunpack.c.h.b16 %v769
    %v1242 = vunpack.c.l.b16 %v770
    %v1243 = vunpack.c.h.b16 %v770
    %v1244 = vunpack.c.l.b16 %v771
    %v1245 = vunpack.c.h.b16 %v771
    %v1246 = vunpack.c.l.b16 %v772
    %v1247 = vunpack.c.h.b16 %v772
    %v1248 = vunpack.c.l.b16 %v773
    %v1249 = vunpack.c.h.b16 %v773
    %v1250 = vunpack.c.l.b16 %v774
    %v1251 = vunpack.c.h.b16 %v774
    %v1252 = vunpack.c.l.b16 %v775
    %v1253 = vunpack.c.h.b16 %v775
    %v1254 = vunpack.c.l.b16 %v776
    %v1255 = vunpack.c.h.b16 %v776
    %v1256 = vunpack.c.l.b16 %v777
    %v1257 = vunpack.c.h.b16 %v777
    %v1258 = vunpack.c.l.b16 %v778
    %v1259 = vunpack.c.h.b16 %v778
    %v1260 = vunpack.c.l.b16 %v779
    %v1261 = vunpack.c.h.b16 %v779
    %v1262 = vunpack.c.l.b16 %v780
    %v1263 = vunpack.c.h.b16 %v780
    %v1264 = vunpack.c.l.b16 %v781
    %v1265 = vunpack.c.h.b16 %v781
    %v1266 = vunpack.c.l.b16 %v782
    %v1267 = vunpack.c.h.b16 %v782
    %v1268 = vunpack.c.l.b16 %v783
    %v1269 = vunpack.c.h.b16 %v783
    %v1270 = vunpack.c.l.b16 %v784
    %v1271 = vunpack.c.h.b16 %v784
    %v1272 = vunpack.c.l.b16 %v785
    %v1273 = vunpack.c.h.b16 %v785
    %v1274 = vunpack.c.l.b16 %v786
    %v1275 = vunpack.c.h.b16 %v786
    %v1276 = vunpack.c.l.b16 %v787
    %v1277 = vunpack.c.h.b16 %v787
    %v1278 = vunpack.c.l.b16 %v788
    %v1279 = vunpack.c.h.b16 %v788
    %v1280 = vunpack.c.l.b16 %v789
    %v1281 = vunpack.c.h.b16 %v789
    %v1282 = vunpack.c.l.b16 %v790
    %v1283 = vunpack.c.h.b16 %v790
    %v1284 = vunpack.c.l.b16 %v791
    %v1285 = vunpack.c.h.b16 %v791
    %v1286 = vunpack.c.l.b16 %v792
    %v1287 = vunpack.c.h.b16 %v792
    %v1288 = vunpack.c.l.b16 %v793
    %v1289 = vunpack.c.h.b16 %v793
    %v1290 = vunpack.c.l.b16 %v794
    %v1291 = vunpack.c.h.b16 %v794
    %v1292 = vunpack.c.l.b16 %v795
    %v1293 = vunpack.c.h.b16 %v795
    %v1294 = vunpack.c.l.b16 %v796
    %v1295 = vunpack.c.h.b16 %v796
    %v1296 = vunpack.c.l.b16 %v797
    %v1297 = vunpack.c.h.b16 %v797
    %v1298 = vunpack.c.l.b16 %v798
    %v1299 = vunpack.c.h.b16 %v798
    %v1300 = vunpack.c.l.b16 %v799
    %v1301 = vunpack.c.h.b16 %v799
    %v1302 = vunpack.c.l.b16 %v800
    %v1303 = vunpack.c.h.b16 %v800
    %v1304 = vunpack.c.l.b16 %v801
    %v1305 = vunpack.c.h.b16 %v801
    %v1306 = vunpack.c.l.b16 %v802
    %v1307 = vunpack.c.h.b16 %v802
    %v1308 = vunpack.c.l.b16 %v803
    %v1309 = vunpack.c.h.b16 %v803
    %v1310 = vunpack.c.l.b16 %v804
    %v1311 = vunpack.c.h.b16 %v804
    %v1312 = vunpack.c.l.b16 %v805
    %v1313 = vunpack.c.h.b16 %v805
    %v1314 = vunpack.c.l.b16 %v806
    %v1315 = vunpack.c.h.b16 %v806
    %v1316 = vunpack.c.l.b16 %v807
    %v1317 = vunpack.c.h.b16 %v807
    %v1318 = vunpack.c.l.b16 %v808
    %v1319 = vunpack.c.h.b16 %v808
    %v1320 = vunpack.c.l.b16 %v809
    %v1321 = vunpack.c.h.b16 %v809
    %v1322 = vunpack.c.l.b16 %v810
    %v1323 = vunpack.c.h.b16 %v810
    %v1324 = vunpack.c.l.b16 %v811
    %v1325 = vunpack.c.h.b16 %v811
    %v1326 = vunpack.c.l.b16 %v812
    %v1327 = vunpack.c.h.b16 %v812
    %v1328 = vunpack.c.l.b16 %v813
    %v1329 = vunpack.c.h.b16 %v813
    %v1330 = vunpack.c.l.b16 %v814
    %v1331 = vunpack.c.h.b16 %v814
    %v1332 = vunpack.c.l.b16 %v815
    %v1333 = vunpack.c.h.b16 %v815
    %v1334 = vunpack.c.l.b16 %v816
    %v1335 = vunpack.c.h.b16 %v816
    %v1336 = vunpack.c.l.b16 %v817
    %v1337 = vunpack.c.h.b16 %v817
    %v1338 = vunpack.c.l.b16 %v818
    %v1339 = vunpack.c.h.b16 %v818
    %v1340 = vunpack.c.l.b16 %v819
    %v1341 = vunpack.c.h.b16 %v819
    %v1342 = vunpack.c.l.b16 %v820
    %v1343 = vunpack.c.h.b16 %v820
    %v1344 = vunpack.c.l.b16 %v821
    %v1345 = vunpack.c.h.b16 %v821
    %v1346 = vunpack.c.l.b16 %v822
    %v1347 = vunpack.c.h.b16 %v822
    %v1348 = vunpack.c.l.b16 %v823
    %v1349 = vunpack.c.h.b16 %v823
    %v1350 = vunpack.c.l.b16 %v824
    %v1351 = vunpack.c.h.b16 %v824
    %v1352 = vunpack.c.l.b16 %v825
    %v1353 = vunpack.c.h.b16 %v825
    %v1354 = vunpack.c.l.b16 %v826
    %v1355 = vunpack.c.h.b16 %v826
    %v1356 = vunpack.c.l.b16 %v827
    %v1357 = vunpack.c.h.b16 %v827
    %v1358 = vunpack.c.l.b16 %v828
    %v1359 = vunpack.c.h.b16 %v828
    %v1360 = vunpack.c.l.b16 %v829
    %v1361 = vunpack.c.h.b16 %v829
    %v1362 = vunpack.c.l.b16 %v830
    %v1363 = vunpack.c.h.b16 %v830
    %v1364 = vunpack.c.l.b16 %v831
    %v1365 = vunpack.c.h.b16 %v831
    %v1366 = vunpack.c.l.b16 %v832
    %v1367 = vunpack.c.h.b16 %v832
    %v1368 = vunpack.c.l.b16 %v833
    %v1369 = vunpack.c.h.b16 %v833
    %v1370 = vunpack.c.l.b16 %v834
    %v1371 = vunpack.c.h.b16 %v834
    %v1372 = vunpack.c.l.b16 %v835
    %v1373 = vunpack.c.h.b16 %v835
    %v1374 = vunpack.c.l.b16 %v836
    %v1375 = vunpack.c.h.b16 %v836
    %v1376 = vunpack.c.l.b16 %v837
    %v1377 = vunpack.c.h.b16 %v837
    %v1378 = vunpack.c.l.b16 %v838
    %v1379 = vunpack.c.h.b16 %v838
    %v1380 = vunpack.c.l.b16 %v839
    %v1381 = vunpack.c.h.b16 %v839
    %v1382 = vunpack.c.l.b16 %v840
    %v1383 = vunpack.c.h.b16 %v840
    %v1384 = vunpack.c.l.b16 %v841
    %v1385 = vunpack.c.h.b16 %v841
    %v1386 = vunpack.c.l.b16 %v842
    %v1387 = vunpack.c.h.b16 %v842
    %v1388 = vunpack.c.l.b16 %v843
    %v1389 = vunpack.c.h.b16 %v843
    %v1390 = vunpack.c.l.b16 %v844
    %v1391 = vunpack.c.h.b16 %v844
    %v1392 = vunpack.c.l.b16 %v845
    %v1393 = vunpack.c.h.b16 %v845
    %v1394 = vunpack.c.l.b16 %v846
    %v1395 = vunpack.c.h.b16 %v846
    %v1396 = vunpack.c.l.b16 %v847
    %v1397 = vunpack.c.h.b16 %v847
    %v1398 = vunpack.c.l.b16 %v848
    %v1399 = vunpack.c.h.b16 %v848
    %v1400 = vunpack.c.l.b16 %v849
    %v1401 = vunpack.c.h.b16 %v849
    %v1402 = vunpack.c.l.b16 %v850
    %v1403 = vunpack.c.h.b16 %v850
    %v1404 = vunpack.c.l.b16 %v851
    %v1405 = vunpack.c.h.b16 %v851
    %v1406 = vunpack.c.l.b16 %v852
    %v1407 = vunpack.c.h.b16 %v852
    %v1408 = vunpack.c.l.b16 %v853
    %v1409 = vunpack.c.h.b16 %v853
    %v1410 = vunpack.c.l.b16 %v854
    %v1411 = vunpack.c.h.b16 %v854
    %v1412 = vunpack.c.l.b16 %v855
    %v1413 = vunpack.c.h.b16 %v855
    %v1414 = vunpack.c.l.b16 %v856
    %v1415 = vunpack.c.h.b16 %v856
    %v1416 = vunpack.c.l.b16 %v857
    %v1417 = vunpack.c.h.b16 %v857
    %v1418 = vunpack.c.l.b16 %v858
    %v1419 = vunpack.c.h.b16 %v858
    %v1420 = vunpack.c.l.b16 %v859
    %v1421 = vunpack.c.h.b16 %v859
    %v1422 = vunpack.c.l.b16 %v860
    %v1423 = vunpack.c.h.b16 %v860
    %v1424 = vunpack.c.l.b16 %v861
    %v1425 = vunpack.c.h.b16 %v861
    %v1426 = vunpack.c.l.b16 %v862
    %v1427 = vunpack.c.h.b16 %v862
    %v1428 = vunpack.c.l.b16 %v863
    %v1429 = vunpack.c.h.b16 %v863
    %v1430 = vunpack.c.l.b16 %v864
    %v1431 = vunpack.c.h.b16 %v864
    %v1432 = vunpack.c.l.b16 %v865
    %v1433 = vunpack.c.h.b16 %v865
    %v1434 = vunpack.c.l.b16 %v866
    %v1435 = vunpack.c.h.b16 %v866
    %v1436 = vunpack.c.l.b16 %v867
    %v1437 = vunpack.c.h.b16 %v867
    %v1438 = vunpack.c.l.b16 %v868
    %v1439 = vunpack.c.h.b16 %v868
    %v1440 = vunpack.c.l.b16 %v869
    %v1441 = vunpack.c.h.b16 %v869
    %v1442 = vunpack.c.l.b16 %v870
    %v1443 = vunpack.c.h.b16 %v870
    %v1444 = vunpack.c.l.b16 %v871
    %v1445 = vunpack.c.h.b16 %v871
    %v1446 = vunpack.c.l.b16 %v872
    %v1447 = vunpack.c.h.b16 %v872
    %v1448 = vunpack.c.l.b16 %v873
    %v1449 = vunpack.c.h.b16 %v873
    %v1450 = vpack.c.b16 %v1072, %v1066
    %v1451 = vpack.c.b16 %v1073, %v1067
    %v1452 = vpack.c.b16 %v1074, %v1068
    %v1453 = vpack.c.b16 %v1075, %v1069
    %v1454 = vpack.c.b16 %v1076, %v1070
    %v1455 = vpack.c.b16 %v1077, %v1071
    %v1456 = vpack.c.b16 %v1084, %v1078
    %v1457 = vpack.c.b16 %v1085, %v1079
    %v1458 = vpack.c.b16 %v1086, %v1080
    %v1459 = vpack.c.b16 %v1087, %v1081
    %v1460 = vpack.c.b16 %v1088, %v1082
    %v1461 = vpack.c.b16 %v1089, %v1083
    %v1462 = vpack.c.b16 %v1096, %v1090
    %v1463 = vpack.c.b16 %v1097, %v1091
    %v1464 = vpack.c.b16 %v1098, %v1092
    %v1465 = vpack.c.b16 %v1099, %v1093
    %v1466 = vpack.c.b16 %v1100, %v1094
    %v1467 = vpack.c.b16 %v1101, %v1095
    %v1468 = vpack.c.b16 %v1108, %v1102
    %v1469 = vpack.c.b16 %v1109, %v1103
    %v1470 = vpack.c.b16 %v1110, %v1104
    %v1471 = vpack.c.b16 %v1111, %v1105
    %v1472 = vpack.c.b16 %v1112, %v1106
    %v1473 = vpack.c.b16 %v1113, %v1107
    %v1474 = vpack.c.b16 %v1120, %v1114
    %v1475 = vpack.c.b16 %v1121, %v1115
    %v1476 = vpack.c.b16 %v1122, %v1116
    %v1477 = vpack.c.b16 %v1123, %v1117
    %v1478 = vpack.c.b16 %v1124, %v1118
    %v1479 = vpack.c.b16 %v1125, %v1119
    %v1480 = vpack.c.b16 %v1132, %v1126
    %v1481 = vpack.c.b16 %v1133, %v1127
    %v1482 = vpack.c.b16 %v1134, %v1128
    %v1483 = vpack.c.b16 %v1135, %v1129
    %v1484 = vpack.c.b16 %v1136, %v1130
    %v1485 = vpack.c.b16 %v1137, %v1131
    %v1486 = vpack.c.b16 %v1144, %v1138
    %v1487 = vpack.c.b16 %v1145, %v1139
    %v1488 = vpack.c.b16 %v1146, %v1140
    %v1489 = vpack.c.b16 %v1147, %v1141
    %v1490 = vpack.c.b16 %v1148, %v1142
    %v1491 = vpack.c.b16 %v1149, %v1143
    %v1492 = vpack.c.b16 %v1156, %v1150
    %v1493 = vpack.c.b16 %v1157, %v1151
    %v1494 = vpack.c.b16 %v1158, %v1152
    %v1495 = vpack.c.b16 %v1159, %v1153
    %v1496 = vpack.c.b16 %v1160, %v1154
    %v1497 = vpack.c.b16 %v1161, %v1155
    %v1498 = vpack.c.b16 %v1168, %v1162
    %v1499 = vpack.c.b16 %v1169, %v1163
    %v1500 = vpack.c.b16 %v1170, %v1164
    %v1501 = vpack.c.b16 %v1171, %v1165
    %v1502 = vpack.c.b16 %v1172, %v1166
    %v1503 = vpack.c.b16 %v1173, %v1167
    %v1504 = vpack.c.b16 %v1180, %v1174
    %v1505 = vpack.c.b16 %v1181, %v1175
    %v1506 = vpack.c.b16 %v1182, %v1176
    %v1507 = vpack.c.b16 %v1183, %v1177
    %v1508 = vpack.c.b16 %v1184, %v1178
    %v1509 = vpack.c.b16 %v1185, %v1179
    %v1510 = vpack.c.b16 %v1192, %v1186
    %v1511 = vpack.c.b16 %v1193, %v1187
    %v1512 = vpack.c.b16 %v1194, %v1188
    %v1513 = vpack.c.b16 %v1195, %v1189
    %v1514 = vpack.c.b16 %v1196, %v1190
    %v1515 = vpack.c.b16 %v1197, %v1191
    %v1516 = vpack.c.b16 %v1204, %v1198
    %v1517 = vpack.c.b16 %v1205, %v1199
    %v1518 = vpack.c.b16 %v1206, %v1200
    %v1519 = vpack.c.b16 %v1207, %v1201
    %v1520 = vpack.c.b16 %v1208, %v1202
    %v1521 = vpack.c.b16 %v1209, %v1203
    %v1522 = vpack.c.b16 %v1216, %v1210
    %v1523 = vpack.c.b16 %v1217, %v1211
    %v1524 = vpack.c.b16 %v1218, %v1212
    %v1525 = vpack.c.b16 %v1219, %v1213
    %v1526 = vpack.c.b16 %v1220, %v1214
    %v1527 = vpack.c.b16 %v1221, %v1215
    %v1528 = vpack.c.b16 %v1228, %v1222
    %v1529 = vpack.c.b16 %v1229, %v1223
    %v1530 = vpack.c.b16 %v1230, %v1224
    %v1531 = vpack.c.b16 %v1231, %v1225
    %v1532 = vpack.c.b16 %v1232, %v1226
    %v1533 = vpack.c.b16 %v1233, %v1227
    %v1534 = vpack.c.b16 %v1240, %v1234
    %v1535 = vpack.c.b16 %v1241, %v1235
    %v1536 = vpack.c.b16 %v1242, %v1236
    %v1537 = vpack.c.b16 %v1243, %v1237
    %v1538 = vpack.c.b16 %v1244, %v1238
    %v1539 = vpack.c.b16 %v1245, %v1239
    %v1540 = vpack.c.b16 %v1252, %v1246
    %v1541 = vpack.c.b16 %v1253, %v1247
    %v1542 = vpack.c.b16 %v1254, %v1248
    %v1543 = vpack.c.b16 %v1255, %v1249
    %v1544 = vpack.c.b16 %v1256, %v1250
    %v1545 = vpack.c.b16 %v1257, %v1251
    %v1546 = vpack.c.b16 %v1264, %v1258
    %v1547 = vpack.c.b16 %v1265, %v1259
    %v1548 = vpack.c.b16 %v1266, %v1260
    %v1549 = vpack.c.b16 %v1267, %v1261
    %v1550 = vpack.c.b16 %v1268, %v1262
    %v1551 = vpack.c.b16 %v1269, %v1263
    %v1552 = vpack.c.b16 %v1276, %v1270
    %v1553 = vpack.c.b16 %v1277, %v1271
    %v1554 = vpack.c.b16 %v1278, %v1272
    %v1555 = vpack.c.b16 %v1279, %v1273
    %v1556 = vpack.c.b16 %v1280, %v1274
    %v1557 = vpack.c.b16 %v1281, %v1275
    %v1558 = vpack.c.b16 %v1288, %v1282
    %v1559 = vpack.c.b16 %v1289, %v1283
    %v1560 = vpack.c.b16 %v1290, %v1284
    %v1561 = vpack.c.b16 %v1291, %v1285
    %v1562 = vpack.c.b16 %v1292, %v1286
    %v1563 = vpack.c.b16 %v1293, %v1287
    %v1564 = vpack.c.b16 %v1300, %v1294
    %v1565 = vpack.c.b16 %v1301, %v1295
    %v1566 = vpack.c.b16 %v1302, %v1296
    %v1567 = vpack.c.b16 %v1303, %v1297
    %v1568 = vpack.c.b16 %v1304, %v1298
    %v1569 = vpack.c.b16 %v1305, %v1299
    %v1570 = vpack.c.b16 %v1312, %v1306
    %v1571 = vpack.c.b16 %v1313, %v1307
    %v1572 = vpack.c.b16 %v1314, %v1308
    %v1573 = vpack.c.b16 %v1315, %v1309
    %v1574 = vpack.c.b16 %v1316, %v1310
    %v1575 = vpack.c.b16 %v1317, %v1311
    %v1576 = vpack.c.b16 %v1324, %v1318
    %v1577 = vpack.c.b16 %v1325, %v1319
    %v1578 = vpack.c.b16 %v1326, %v1320
    %v1579 = vpack.c.b16 %v1327, %v1321
    %v1580 = vpack.c.b16 %v1328, %v1322
    %v1581 = vpack.c.b16 %v1329, %v1323
    %v1582 = vpack.c.b16 %v1336, %v1330
    %v1583 = vpack.c.b16 %v1337, %v1331
    %v1584 = vpack.c.b16 %v1338, %v1332
    %v1585 = vpack.c.b16 %v1339, %v1333
    %v1586 = vpack.c.b16 %v1340, %v1334
    %v1587 = vpack.c.b16 %v1341, %v1335
    %v1588 = vpack.c.b16 %v1348, %v1342
    %v1589 = vpack.c.b16 %v1349, %v1343
    %v1590 = vpack.c.b16 %v1350, %v1344
    %v1591 = vpack.c.b16 %v1351, %v1345
    %v1592 = vpack.c.b16 %v1352, %v1346
    %v1593 = vpack.c.b16 %v1353, %v1347
    %v1594 = vpack.c.b16 %v1360, %v1354
    %v1595 = vpack.c.b16 %v1361, %v1355
    %v1596 = vpack.c.b16 %v1362, %v1356
    %v1597 = vpack.c.b16 %v1363, %v1357
    %v1598 = vpack.c.b16 %v1364, %v1358
    %v1599 = vpack.c.b16 %v1365, %v1359
    %v1600 = vpack.c.b16 %v1372, %v1366
    %v1601 = vpack.c.b16 %v1373, %v1367
    %v1602 = vpack.c.b16 %v1374, %v1368
    %v1603 = vpack.c.b16 %v1375, %v1369
    %v1604 = vpack.c.b16 %v1376, %v1370
    %v1605 = vpack.c.b16 %v1377, %v1371
    %v1606 = vpack.c.b16 %v1384, %v1378
    %v1607 = vpack.c.b16 %v1385, %v1379
    %v1608 = vpack.c.b16 %v1386, %v1380
    %v1609 = vpack.c.b16 %v1387, %v1381
    %v1610 = vpack.c.b16 %v1388, %v1382
    %v1611 = vpack.c.b16 %v1389, %v1383
    %v1612 = vpack.c.b16 %v1396, %v1390
    %v1613 = vpack.c.b16 %v1397, %v1391
    %v1614 = vpack.c.b16 %v1398, %v1392
    %v1615 = vpack.c.b16 %v1399, %v1393
    %v1616 = vpack.c.b16 %v1400, %v1394
    %v1617 = vpack.c.b16 %v1401, %v1395
    %v1618 = vpack.c.b16 %v1408, %v1402
    %v1619 = vpack.c.b16 %v1409, %v1403
    %v1620 = vpack.c.b16 %v1410, %v1404
    %v1621 = vpack.c.b16 %v1411, %v1405
    %v1622 = vpack.c.b16 %v1412, %v1406
    %v1623 = vpack.c.b16 %v1413, %v1407
    %v1624 = vpack.c.b16 %v1420, %v1414
    %v1625 = vpack.c.b16 %v1421, %v1415
    %v1626 = vpack.c.b16 %v1422, %v1416
    %v1627 = vpack.c.b16 %v1423, %v1417
    %v1628 = vpack.c.b16 %v1424, %v1418
    %v1629 = vpack.c.b16 %v1425, %v1419
    %v1630 = vpack.c.b16 %v1432, %v1426
    %v1631 = vpack.c.b16 %v1433, %v1427
    %v1632 = vpack.c.b16 %v1434, %v1428
    %v1633 = vpack.c.b16 %v1435, %v1429
    %v1634 = vpack.c.b16 %v1436, %v1430
    %v1635 = vpack.c.b16 %v1437, %v1431
    %v1636 = vpack.c.b16 %v1444, %v1438
    %v1637 = vpack.c.b16 %v1445, %v1439
    %v1638 = vpack.c.b16 %v1446, %v1440
    %v1639 = vpack.c.b16 %v1447, %v1441
    %v1640 = vpack.c.b16 %v1448, %v1442
    %v1641 = vpack.c.b16 %v1449, %v1443
    %1834 = vmatpush.bf16.msra.mxu0 %v1492
    %1835 = vmatpush.bf16.msra.mxu0 %v1486
    %1836 = vmatpush.bf16.msra.mxu0 %v1480
    %1837 = vmatpush.bf16.msra.mxu0 %v1474
    %1838 = vmatpush.bf16.msra.mxu0 %v1468
    %1839 = vmatpush.bf16.msra.mxu0 %v1462
    %1840 = vmatpush.bf16.msra.mxu0 %v1456
    %1841 = vmatpush.bf16.msra.mxu0 %v1450
    %1842 = vmatmul.bf16.gmra.mxu0 %v678
    %v1843 = vpop.f32.mrf.mxu0
    %v1844 = vadd.f32 0.0, %v1843
    %v1845 = vpop.f32.mrf.mxu0
    %1846 = vdwg.mxu0
    %1847 = vmatpush.bf16.msra.mxu0 %v1540
    %1848 = vmatpush.bf16.msra.mxu0 %v1534
    %1849 = vmatpush.bf16.msra.mxu0 %v1528
    %1850 = vmatpush.bf16.msra.mxu0 %v1522
    %1851 = vmatpush.bf16.msra.mxu0 %v1516
    %1852 = vmatpush.bf16.msra.mxu0 %v1510
    %1853 = vmatpush.bf16.msra.mxu0 %v1504
    %1854 = vmatpush.bf16.msra.mxu0 %v1498
    %1855 = vmatmul.bf16.gmra.mxu0 %v679
    %v1856 = vpop.f32.mrf.mxu0
    %v1857 = vadd.f32 %v1844, %v1856
    %v1858 = vpop.f32.mrf.mxu0
    %1859 = vdwg.mxu0
    %1860 = vmatpush.bf16.msra.mxu0 %v1588
    %1861 = vmatpush.bf16.msra.mxu0 %v1582
    %1862 = vmatpush.bf16.msra.mxu0 %v1576
    %1863 = vmatpush.bf16.msra.mxu0 %v1570
    %1864 = vmatpush.bf16.msra.mxu0 %v1564
    %1865 = vmatpush.bf16.msra.mxu0 %v1558
    %1866 = vmatpush.bf16.msra.mxu0 %v1552
    %1867 = vmatpush.bf16.msra.mxu0 %v1546
    %1868 = vmatmul.bf16.gmra.mxu0 %v680
    %v1869 = vpop.f32.mrf.mxu0
    %v1870 = vadd.f32 %v1857, %v1869
    %v1871 = vpop.f32.mrf.mxu0
    %1872 = vdwg.mxu0
    %1873 = vmatpush.bf16.msra.mxu0 %v1636
    %1874 = vmatpush.bf16.msra.mxu0 %v1630
    %1875 = vmatpush.bf16.msra.mxu0 %v1624
    %1876 = vmatpush.bf16.msra.mxu0 %v1618
    %1877 = vmatpush.bf16.msra.mxu0 %v1612
    %1878 = vmatpush.bf16.msra.mxu0 %v1606
    %1879 = vmatpush.bf16.msra.mxu0 %v1600
    %1880 = vmatpush.bf16.msra.mxu0 %v1594
    %1881 = vmatmul.bf16.gmra.mxu0 %v681
    %v1882 = vpop.f32.mrf.mxu0
    %v1883 = vadd.f32 %v1870, %v1882
    %v1884 = vpop.f32.mrf.mxu0
    %1885 = vdwg.mxu0
    %1886 = vmatpush.bf16.msra.mxu0 %v1493
    %1887 = vmatpush.bf16.msra.mxu0 %v1487
    %1888 = vmatpush.bf16.msra.mxu0 %v1481
    %1889 = vmatpush.bf16.msra.mxu0 %v1475
    %1890 = vmatpush.bf16.msra.mxu0 %v1469
    %1891 = vmatpush.bf16.msra.mxu0 %v1463
    %1892 = vmatpush.bf16.msra.mxu0 %v1457
    %1893 = vmatpush.bf16.msra.mxu0 %v1451
    %1894 = vmatmul.bf16.gmra.mxu0 %v678
    %v1895 = vpop.f32.mrf.mxu0
    %v1896 = vadd.f32 0.0, %v1895
    %v1897 = vpop.f32.mrf.mxu0
    %1898 = vdwg.mxu0
    %1899 = vmatpush.bf16.msra.mxu0 %v1541
    %1900 = vmatpush.bf16.msra.mxu0 %v1535
    %1901 = vmatpush.bf16.msra.mxu0 %v1529
    %1902 = vmatpush.bf16.msra.mxu0 %v1523
    %1903 = vmatpush.bf16.msra.mxu0 %v1517
    %1904 = vmatpush.bf16.msra.mxu0 %v1511
    %1905 = vmatpush.bf16.msra.mxu0 %v1505
    %1906 = vmatpush.bf16.msra.mxu0 %v1499
    %1907 = vmatmul.bf16.gmra.mxu0 %v679
    %v1908 = vpop.f32.mrf.mxu0
    %v1909 = vadd.f32 %v1896, %v1908
    %v1910 = vpop.f32.mrf.mxu0
    %1911 = vdwg.mxu0
    %1912 = vmatpush.bf16.msra.mxu0 %v1589
    %1913 = vmatpush.bf16.msra.mxu0 %v1583
    %1914 = vmatpush.bf16.msra.mxu0 %v1577
    %1915 = vmatpush.bf16.msra.mxu0 %v1571
    %1916 = vmatpush.bf16.msra.mxu0 %v1565
    %1917 = vmatpush.bf16.msra.mxu0 %v1559
    %1918 = vmatpush.bf16.msra.mxu0 %v1553
    %1919 = vmatpush.bf16.msra.mxu0 %v1547
    %1920 = vmatmul.bf16.gmra.mxu0 %v680
    %v1921 = vpop.f32.mrf.mxu0
    %v1922 = vadd.f32 %v1909, %v1921
    %v1923 = vpop.f32.mrf.mxu0
    %1924 = vdwg.mxu0
    %1925 = vmatpush.bf16.msra.mxu0 %v1637
    %1926 = vmatpush.bf16.msra.mxu0 %v1631
    %1927 = vmatpush.bf16.msra.mxu0 %v1625
    %1928 = vmatpush.bf16.msra.mxu0 %v1619
    %1929 = vmatpush.bf16.msra.mxu0 %v1613
    %1930 = vmatpush.bf16.msra.mxu0 %v1607
    %1931 = vmatpush.bf16.msra.mxu0 %v1601
    %1932 = vmatpush.bf16.msra.mxu0 %v1595
    %1933 = vmatmul.bf16.gmra.mxu0 %v681
    %v1934 = vpop.f32.mrf.mxu0
    %v1935 = vadd.f32 %v1922, %v1934
    %v1936 = vpop.f32.mrf.mxu0
    %1937 = vdwg.mxu0
    %1938 = vmatpush.bf16.msra.mxu0 %v1494
    %1939 = vmatpush.bf16.msra.mxu0 %v1488
    %1940 = vmatpush.bf16.msra.mxu0 %v1482
    %1941 = vmatpush.bf16.msra.mxu0 %v1476
    %1942 = vmatpush.bf16.msra.mxu0 %v1470
    %1943 = vmatpush.bf16.msra.mxu0 %v1464
    %1944 = vmatpush.bf16.msra.mxu0 %v1458
    %1945 = vmatpush.bf16.msra.mxu0 %v1452
    %1946 = vmatmul.bf16.gmra.mxu0 %v678
    %v1947 = vpop.f32.mrf.mxu0
    %v1948 = vadd.f32 0.0, %v1947
    %v1949 = vpop.f32.mrf.mxu0
    %1950 = vdwg.mxu0
    %1951 = vmatpush.bf16.msra.mxu0 %v1542
    %1952 = vmatpush.bf16.msra.mxu0 %v1536
    %1953 = vmatpush.bf16.msra.mxu0 %v1530
    %1954 = vmatpush.bf16.msra.mxu0 %v1524
    %1955 = vmatpush.bf16.msra.mxu0 %v1518
    %1956 = vmatpush.bf16.msra.mxu0 %v1512
    %1957 = vmatpush.bf16.msra.mxu0 %v1506
    %1958 = vmatpush.bf16.msra.mxu0 %v1500
    %1959 = vmatmul.bf16.gmra.mxu0 %v679
    %v1960 = vpop.f32.mrf.mxu0
    %v1961 = vadd.f32 %v1948, %v1960
    %v1962 = vpop.f32.mrf.mxu0
    %1963 = vdwg.mxu0
    %1964 = vmatpush.bf16.msra.mxu0 %v1590
    %1965 = vmatpush.bf16.msra.mxu0 %v1584
    %1966 = vmatpush.bf16.msra.mxu0 %v1578
    %1967 = vmatpush.bf16.msra.mxu0 %v1572
    %1968 = vmatpush.bf16.msra.mxu0 %v1566
    %1969 = vmatpush.bf16.msra.mxu0 %v1560
    %1970 = vmatpush.bf16.msra.mxu0 %v1554
    %1971 = vmatpush.bf16.msra.mxu0 %v1548
    %1972 = vmatmul.bf16.gmra.mxu0 %v680
    %v1973 = vpop.f32.mrf.mxu0
    %v1974 = vadd.f32 %v1961, %v1973
    %v1975 = vpop.f32.mrf.mxu0
    %1976 = vdwg.mxu0
    %1977 = vmatpush.bf16.msra.mxu0 %v1638
    %1978 = vmatpush.bf16.msra.mxu0 %v1632
    %1979 = vmatpush.bf16.msra.mxu0 %v1626
    %1980 = vmatpush.bf16.msra.mxu0 %v1620
    %1981 = vmatpush.bf16.msra.mxu0 %v1614
    %1982 = vmatpush.bf16.msra.mxu0 %v1608
    %1983 = vmatpush.bf16.msra.mxu0 %v1602
    %1984 = vmatpush.bf16.msra.mxu0 %v1596
    %1985 = vmatmul.bf16.gmra.mxu0 %v681
    %v1986 = vpop.f32.mrf.mxu0
    %v1987 = vadd.f32 %v1974, %v1986
    %v1988 = vpop.f32.mrf.mxu0
    %1989 = vdwg.mxu0
    %1990 = vmatpush.bf16.msra.mxu0 %v1495
    %1991 = vmatpush.bf16.msra.mxu0 %v1489
    %1992 = vmatpush.bf16.msra.mxu0 %v1483
    %1993 = vmatpush.bf16.msra.mxu0 %v1477
    %1994 = vmatpush.bf16.msra.mxu0 %v1471
    %1995 = vmatpush.bf16.msra.mxu0 %v1465
    %1996 = vmatpush.bf16.msra.mxu0 %v1459
    %1997 = vmatpush.bf16.msra.mxu0 %v1453
    %1998 = vmatmul.bf16.gmra.mxu0 %v678
    %v1999 = vpop.f32.mrf.mxu0
    %v2000 = vadd.f32 0.0, %v1999
    %v2001 = vpop.f32.mrf.mxu0
    %2002 = vdwg.mxu0
    %2003 = vmatpush.bf16.msra.mxu0 %v1543
    %2004 = vmatpush.bf16.msra.mxu0 %v1537
    %2005 = vmatpush.bf16.msra.mxu0 %v1531
    %2006 = vmatpush.bf16.msra.mxu0 %v1525
    %2007 = vmatpush.bf16.msra.mxu0 %v1519
    %2008 = vmatpush.bf16.msra.mxu0 %v1513
    %2009 = vmatpush.bf16.msra.mxu0 %v1507
    %2010 = vmatpush.bf16.msra.mxu0 %v1501
    %2011 = vmatmul.bf16.gmra.mxu0 %v679
    %v2012 = vpop.f32.mrf.mxu0
    %v2013 = vadd.f32 %v2000, %v2012
    %v2014 = vpop.f32.mrf.mxu0
    %2015 = vdwg.mxu0
    %2016 = vmatpush.bf16.msra.mxu0 %v1591
    %2017 = vmatpush.bf16.msra.mxu0 %v1585
    %2018 = vmatpush.bf16.msra.mxu0 %v1579
    %2019 = vmatpush.bf16.msra.mxu0 %v1573
    %2020 = vmatpush.bf16.msra.mxu0 %v1567
    %2021 = vmatpush.bf16.msra.mxu0 %v1561
    %2022 = vmatpush.bf16.msra.mxu0 %v1555
    %2023 = vmatpush.bf16.msra.mxu0 %v1549
    %2024 = vmatmul.bf16.gmra.mxu0 %v680
    %v2025 = vpop.f32.mrf.mxu0
    %v2026 = vadd.f32 %v2013, %v2025
    %v2027 = vpop.f32.mrf.mxu0
    %2028 = vdwg.mxu0
    %2029 = vmatpush.bf16.msra.mxu0 %v1639
    %2030 = vmatpush.bf16.msra.mxu0 %v1633
    %2031 = vmatpush.bf16.msra.mxu0 %v1627
    %2032 = vmatpush.bf16.msra.mxu0 %v1621
    %2033 = vmatpush.bf16.msra.mxu0 %v1615
    %2034 = vmatpush.bf16.msra.mxu0 %v1609
    %2035 = vmatpush.bf16.msra.mxu0 %v1603
    %2036 = vmatpush.bf16.msra.mxu0 %v1597
    %2037 = vmatmul.bf16.gmra.mxu0 %v681
    %v2038 = vpop.f32.mrf.mxu0
    %v2039 = vadd.f32 %v2026, %v2038
    %v2040 = vpop.f32.mrf.mxu0
    %2041 = vdwg.mxu0
    %2042 = vmatpush.bf16.msra.mxu0 %v1496
    %2043 = vmatpush.bf16.msra.mxu0 %v1490
    %2044 = vmatpush.bf16.msra.mxu0 %v1484
    %2045 = vmatpush.bf16.msra.mxu0 %v1478
    %2046 = vmatpush.bf16.msra.mxu0 %v1472
    %2047 = vmatpush.bf16.msra.mxu0 %v1466
    %2048 = vmatpush.bf16.msra.mxu0 %v1460
    %2049 = vmatpush.bf16.msra.mxu0 %v1454
    %2050 = vmatmul.bf16.gmra.mxu0 %v678
    %v2051 = vpop.f32.mrf.mxu0
    %v2052 = vadd.f32 0.0, %v2051
    %v2053 = vpop.f32.mrf.mxu0
    %2054 = vdwg.mxu0
    %2055 = vmatpush.bf16.msra.mxu0 %v1544
    %2056 = vmatpush.bf16.msra.mxu0 %v1538
    %2057 = vmatpush.bf16.msra.mxu0 %v1532
    %2058 = vmatpush.bf16.msra.mxu0 %v1526
    %2059 = vmatpush.bf16.msra.mxu0 %v1520
    %2060 = vmatpush.bf16.msra.mxu0 %v1514
    %2061 = vmatpush.bf16.msra.mxu0 %v1508
    %2062 = vmatpush.bf16.msra.mxu0 %v1502
    %2063 = vmatmul.bf16.gmra.mxu0 %v679
    %v2064 = vpop.f32.mrf.mxu0
    %v2065 = vadd.f32 %v2052, %v2064
    %v2066 = vpop.f32.mrf.mxu0
    %2067 = vdwg.mxu0
    %2068 = vmatpush.bf16.msra.mxu0 %v1592
    %2069 = vmatpush.bf16.msra.mxu0 %v1586
    %2070 = vmatpush.bf16.msra.mxu0 %v1580
    %2071 = vmatpush.bf16.msra.mxu0 %v1574
    %2072 = vmatpush.bf16.msra.mxu0 %v1568
    %2073 = vmatpush.bf16.msra.mxu0 %v1562
    %2074 = vmatpush.bf16.msra.mxu0 %v1556
    %2075 = vmatpush.bf16.msra.mxu0 %v1550
    %2076 = vmatmul.bf16.gmra.mxu0 %v680
    %v2077 = vpop.f32.mrf.mxu0
    %v2078 = vadd.f32 %v2065, %v2077
    %v2079 = vpop.f32.mrf.mxu0
    %2080 = vdwg.mxu0
    %2081 = vmatpush.bf16.msra.mxu0 %v1640
    %2082 = vmatpush.bf16.msra.mxu0 %v1634
    %2083 = vmatpush.bf16.msra.mxu0 %v1628
    %2084 = vmatpush.bf16.msra.mxu0 %v1622
    %2085 = vmatpush.bf16.msra.mxu0 %v1616
    %2086 = vmatpush.bf16.msra.mxu0 %v1610
    %2087 = vmatpush.bf16.msra.mxu0 %v1604
    %2088 = vmatpush.bf16.msra.mxu0 %v1598
    %2089 = vmatmul.bf16.gmra.mxu0 %v681
    %v2090 = vpop.f32.mrf.mxu0
    %v2091 = vadd.f32 %v2078, %v2090
    %v2092 = vpop.f32.mrf.mxu0
    %2093 = vdwg.mxu0
    %2094 = vmatpush.bf16.msra.mxu0 %v1497
    %2095 = vmatpush.bf16.msra.mxu0 %v1491
    %2096 = vmatpush.bf16.msra.mxu0 %v1485
    %2097 = vmatpush.bf16.msra.mxu0 %v1479
    %2098 = vmatpush.bf16.msra.mxu0 %v1473
    %2099 = vmatpush.bf16.msra.mxu0 %v1467
    %2100 = vmatpush.bf16.msra.mxu0 %v1461
    %2101 = vmatpush.bf16.msra.mxu0 %v1455
    %2102 = vmatmul.bf16.gmra.mxu0 %v678
    %v2103 = vpop.f32.mrf.mxu0
    %v2104 = vadd.f32 0.0, %v2103
    %v2105 = vpop.f32.mrf.mxu0
    %2106 = vdwg.mxu0
    %2107 = vmatpush.bf16.msra.mxu0 %v1545
    %2108 = vmatpush.bf16.msra.mxu0 %v1539
    %2109 = vmatpush.bf16.msra.mxu0 %v1533
    %2110 = vmatpush.bf16.msra.mxu0 %v1527
    %2111 = vmatpush.bf16.msra.mxu0 %v1521
    %2112 = vmatpush.bf16.msra.mxu0 %v1515
    %2113 = vmatpush.bf16.msra.mxu0 %v1509
    %2114 = vmatpush.bf16.msra.mxu0 %v1503
    %2115 = vmatmul.bf16.gmra.mxu0 %v679
    %v2116 = vpop.f32.mrf.mxu0
    %v2117 = vadd.f32 %v2104, %v2116
    %v2118 = vpop.f32.mrf.mxu0
    %2119 = vdwg.mxu0
    %2120 = vmatpush.bf16.msra.mxu0 %v1593
    %2121 = vmatpush.bf16.msra.mxu0 %v1587
    %2122 = vmatpush.bf16.msra.mxu0 %v1581
    %2123 = vmatpush.bf16.msra.mxu0 %v1575
    %2124 = vmatpush.bf16.msra.mxu0 %v1569
    %2125 = vmatpush.bf16.msra.mxu0 %v1563
    %2126 = vmatpush.bf16.msra.mxu0 %v1557
    %2127 = vmatpush.bf16.msra.mxu0 %v1551
    %2128 = vmatmul.bf16.gmra.mxu0 %v680
    %v2129 = vpop.f32.mrf.mxu0
    %v2130 = vadd.f32 %v2117, %v2129
    %v2131 = vpop.f32.mrf.mxu0
    %2132 = vdwg.mxu0
    %2133 = vmatpush.bf16.msra.mxu0 %v1641
    %2134 = vmatpush.bf16.msra.mxu0 %v1635
    %2135 = vmatpush.bf16.msra.mxu0 %v1629
    %2136 = vmatpush.bf16.msra.mxu0 %v1623
    %2137 = vmatpush.bf16.msra.mxu0 %v1617
    %2138 = vmatpush.bf16.msra.mxu0 %v1611
    %2139 = vmatpush.bf16.msra.mxu0 %v1605
    %2140 = vmatpush.bf16.msra.mxu0 %v1599
    %2141 = vmatmul.bf16.gmra.mxu0 %v681
    %v2142 = vpop.f32.mrf.mxu0
    %v2143 = vadd.f32 %v2130, %v2142
    %v2144 = vpop.f32.mrf.mxu0
    %2145 = vdwg.mxu0
    %v2146 = vld [vmem:[#allocation11] sm:$0x3f]
    %v2148 = vperm.slane %v2146, 0
    %v2149 = vperm.slane %v2146, 1
    %v2150 = vperm.slane %v2146, 2
    %v2151 = vperm.slane %v2146, 3
    %v2152 = vperm.slane %v2146, 4
    %v2153 = vperm.slane %v2146, 5
    %v2160 = vmul.f32 %v1883, %v2148
    %v2161 = vmul.f32 %v1935, %v2149
    %v2162 = vmul.f32 %v1987, %v2150
    %v2163 = vmul.f32 %v2039, %v2151
    %v2164 = vmul.f32 %v2091, %v2152
    %v2165 = vmul.f32 %v2143, %v2153
    %v2166 = vld [vmem:[#allocation13] sm:$0x3f]
    %v2168 = vperm.slane %v2166, 0
    %v2169 = vperm.slane %v2166, 1
    %v2170 = vperm.slane %v2166, 2
    %v2171 = vperm.slane %v2166, 3
    %v2172 = vperm.slane %v2166, 4
    %v2173 = vperm.slane %v2166, 5
    %v2180 = vadd.f32 %v2160, %v2168
    %v2181 = vadd.f32 %v2161, %v2169
    %v2182 = vadd.f32 %v2162, %v2170
    %v2183 = vadd.f32 %v2163, %v2171
    %v2184 = vadd.f32 %v2164, %v2172
    %v2185 = vadd.f32 %v2165, %v2173
    %v2186 = vmax.f32 %v2180, 0.0
    %v2187 = vmax.f32 %v2181, 0.0
    %v2188 = vmax.f32 %v2182, 0.0
    %v2189 = vmax.f32 %v2183, 0.0
    %v2190 = vmax.f32 %v2184, 0.0
    %v2191 = vmax.f32 %v2185, 0.0
    %v2192 = vpack.c.bf16 %v2186, %v2186
    %v2193 = vpack.c.bf16 %v2187, %v2187
    %v2194 = vpack.c.bf16 %v2188, %v2188
    %v2195 = vpack.c.bf16 %v2189, %v2189
    %v2196 = vpack.c.bf16 %v2190, %v2190
    %v2197 = vpack.c.bf16 %v2191, %v2191
    %v2198 = vld [vmem:[#allocation14] sm:$0xf]
    %v2199 = vld [vmem:[#allocation14 + $0x4] sm:$0xf]
    %v2200 = vld [vmem:[#allocation14 + $0x8] sm:$0xf]
    %v2201 = vld [vmem:[#allocation14 + $0xc] sm:$0xf]
    %v2202 = vld [vmem:[#allocation14 + $0x10] sm:$0xf]
    %v2203 = vld [vmem:[#allocation14 + $0x14] sm:$0xf]
    %v2204 = vld [vmem:[#allocation14 + $0x18] sm:$0xf]
    %v2205 = vld [vmem:[#allocation14 + $0x1c] sm:$0xf]
    %v2206 = vld [vmem:[#allocation14 + $0x20] sm:$0xf]
    %v2207 = vld [vmem:[#allocation14 + $0x24] sm:$0xf]
    %v2208 = vld [vmem:[#allocation14 + $0x28] sm:$0xf]
    %v2209 = vld [vmem:[#allocation14 + $0x2c] sm:$0xf]
    %v2210 = vld [vmem:[#allocation14 + $0x30] sm:$0xf]
    %v2211 = vld [vmem:[#allocation14 + $0x34] sm:$0xf]
    %v2212 = vld [vmem:[#allocation14 + $0x38] sm:$0xf]
    %v2213 = vld [vmem:[#allocation14 + $0x3c] sm:$0xf]
    %v2214 = vld [vmem:[#allocation14 + $0x40] sm:$0xf]
    %v2215 = vld [vmem:[#allocation14 + $0x44] sm:$0xf]
    %v2216 = vld [vmem:[#allocation14 + $0x48] sm:$0xf]
    %v2217 = vld [vmem:[#allocation14 + $0x4c] sm:$0xf]
    %v2218 = vld [vmem:[#allocation14 + $0x50] sm:$0xf]
    %v2219 = vld [vmem:[#allocation14 + $0x54] sm:$0xf]
    %v2220 = vld [vmem:[#allocation14 + $0x58] sm:$0xf]
    %v2221 = vld [vmem:[#allocation14 + $0x5c] sm:$0xf]
    %v2222 = vld [vmem:[#allocation14 + $0x60] sm:$0xf]
    %v2223 = vld [vmem:[#allocation14 + $0x64] sm:$0xf]
    %v2224 = vld [vmem:[#allocation14 + $0x68] sm:$0xf]
    %v2225 = vld [vmem:[#allocation14 + $0x6c] sm:$0xf]
    %v2226 = vld [vmem:[#allocation14 + $0x70] sm:$0xf]
    %v2227 = vld [vmem:[#allocation14 + $0x74] sm:$0xf]
    %v2228 = vld [vmem:[#allocation14 + $0x78] sm:$0xf]
    %v2229 = vld [vmem:[#allocation14 + $0x7c] sm:$0xf]
    %v2230 = vld [vmem:[#allocation14 + $0x80] sm:$0xf]
    %v2231 = vld [vmem:[#allocation14 + $0x84] sm:$0xf]
    %v2232 = vld [vmem:[#allocation14 + $0x88] sm:$0xf]
    %v2233 = vld [vmem:[#allocation14 + $0x8c] sm:$0xf]
    %v2234 = vld [vmem:[#allocation14 + $0x90] sm:$0xf]
    %v2235 = vld [vmem:[#allocation14 + $0x94] sm:$0xf]
    %v2236 = vld [vmem:[#allocation14 + $0x98] sm:$0xf]
    %v2237 = vld [vmem:[#allocation14 + $0x9c] sm:$0xf]
    %v2238 = vld [vmem:[#allocation14 + $0xa0] sm:$0xf]
    %v2239 = vld [vmem:[#allocation14 + $0xa4] sm:$0xf]
    %v2240 = vld [vmem:[#allocation14 + $0xa8] sm:$0xf]
    %v2241 = vld [vmem:[#allocation14 + $0xac] sm:$0xf]
    %v2242 = vld [vmem:[#allocation14 + $0xb0] sm:$0xf]
    %v2243 = vld [vmem:[#allocation14 + $0xb4] sm:$0xf]
    %v2244 = vld [vmem:[#allocation14 + $0xb8] sm:$0xf]
    %v2245 = vld [vmem:[#allocation14 + $0xbc] sm:$0xf]
    %v2246 = vld [vmem:[#allocation14 + $0xc0] sm:$0xf]
    %v2247 = vld [vmem:[#allocation14 + $0xc4] sm:$0xf]
    %v2248 = vld [vmem:[#allocation14 + $0xc8] sm:$0xf]
    %v2249 = vld [vmem:[#allocation14 + $0xcc] sm:$0xf]
    %v2250 = vld [vmem:[#allocation14 + $0xd0] sm:$0xf]
    %v2251 = vld [vmem:[#allocation14 + $0xd4] sm:$0xf]
    %v2252 = vld [vmem:[#allocation14 + $0xd8] sm:$0xf]
    %v2253 = vld [vmem:[#allocation14 + $0xdc] sm:$0xf]
    %v2254 = vld [vmem:[#allocation14 + $0xe0] sm:$0xf]
    %v2255 = vld [vmem:[#allocation14 + $0xe4] sm:$0xf]
    %v2256 = vld [vmem:[#allocation14 + $0xe8] sm:$0xf]
    %v2257 = vld [vmem:[#allocation14 + $0xec] sm:$0xf]
    %v2258 = vld [vmem:[#allocation14 + $0xf0] sm:$0xf]
    %v2259 = vld [vmem:[#allocation14 + $0xf4] sm:$0xf]
    %v2260 = vld [vmem:[#allocation14 + $0xf8] sm:$0xf]
    %v2261 = vld [vmem:[#allocation14 + $0xfc] sm:$0xf]
    %v2262 = vld [vmem:[#allocation14 + $0x100] sm:$0xf]
    %v2263 = vld [vmem:[#allocation14 + $0x104] sm:$0xf]
    %v2264 = vld [vmem:[#allocation14 + $0x108] sm:$0xf]
    %v2265 = vld [vmem:[#allocation14 + $0x10c] sm:$0xf]
    %v2266 = vld [vmem:[#allocation14 + $0x110] sm:$0xf]
    %v2267 = vld [vmem:[#allocation14 + $0x114] sm:$0xf]
    %v2268 = vld [vmem:[#allocation14 + $0x118] sm:$0xf]
    %v2269 = vld [vmem:[#allocation14 + $0x11c] sm:$0xf]
    %v2270 = vld [vmem:[#allocation14 + $0x120] sm:$0xf]
    %v2271 = vld [vmem:[#allocation14 + $0x124] sm:$0xf]
    %v2272 = vld [vmem:[#allocation14 + $0x128] sm:$0xf]
    %v2273 = vld [vmem:[#allocation14 + $0x12c] sm:$0xf]
    %v2274 = vld [vmem:[#allocation14 + $0x130] sm:$0xf]
    %v2275 = vld [vmem:[#allocation14 + $0x134] sm:$0xf]
    %v2276 = vld [vmem:[#allocation14 + $0x138] sm:$0xf]
    %v2277 = vld [vmem:[#allocation14 + $0x13c] sm:$0xf]
    %v2278 = vld [vmem:[#allocation14 + $0x140] sm:$0xf]
    %v2279 = vld [vmem:[#allocation14 + $0x144] sm:$0xf]
    %v2280 = vld [vmem:[#allocation14 + $0x148] sm:$0xf]
    %v2281 = vld [vmem:[#allocation14 + $0x14c] sm:$0xf]
    %v2282 = vld [vmem:[#allocation14 + $0x150] sm:$0xf]
    %v2283 = vld [vmem:[#allocation14 + $0x154] sm:$0xf]
    %v2284 = vld [vmem:[#allocation14 + $0x158] sm:$0xf]
    %v2285 = vld [vmem:[#allocation14 + $0x15c] sm:$0xf]
    %v2286 = vld [vmem:[#allocation14 + $0x160] sm:$0xf]
    %v2287 = vld [vmem:[#allocation14 + $0x164] sm:$0xf]
    %v2288 = vld [vmem:[#allocation14 + $0x168] sm:$0xf]
    %v2289 = vld [vmem:[#allocation14 + $0x16c] sm:$0xf]
    %v2290 = vld [vmem:[#allocation14 + $0x170] sm:$0xf]
    %v2291 = vld [vmem:[#allocation14 + $0x174] sm:$0xf]
    %v2292 = vld [vmem:[#allocation14 + $0x178] sm:$0xf]
    %v2293 = vld [vmem:[#allocation14 + $0x17c] sm:$0xf]
    %v2294 = vld [vmem:[%s8] sm:$0x1]
    %v2296 = vperm.slane %v2294, 0
    %v2394 = vunpack.c.l.b16 %v2198
    %v2395 = vunpack.c.l.b16 %v2199
    %v2396 = vunpack.c.l.b16 %v2200
    %v2397 = vunpack.c.l.b16 %v2201
    %v2398 = vunpack.c.l.b16 %v2202
    %v2399 = vunpack.c.l.b16 %v2203
    %v2400 = vunpack.c.l.b16 %v2204
    %v2401 = vunpack.c.l.b16 %v2205
    %v2402 = vunpack.c.l.b16 %v2206
    %v2403 = vunpack.c.l.b16 %v2207
    %v2404 = vunpack.c.l.b16 %v2208
    %v2405 = vunpack.c.l.b16 %v2209
    %v2406 = vunpack.c.l.b16 %v2210
    %v2407 = vunpack.c.l.b16 %v2211
    %v2408 = vunpack.c.l.b16 %v2212
    %v2409 = vunpack.c.l.b16 %v2213
    %v2410 = vunpack.c.l.b16 %v2214
    %v2411 = vunpack.c.l.b16 %v2215
    %v2412 = vunpack.c.l.b16 %v2216
    %v2413 = vunpack.c.l.b16 %v2217
    %v2414 = vunpack.c.l.b16 %v2218
    %v2415 = vunpack.c.l.b16 %v2219
    %v2416 = vunpack.c.l.b16 %v2220
    %v2417 = vunpack.c.l.b16 %v2221
    %v2418 = vunpack.c.l.b16 %v2222
    %v2419 = vunpack.c.l.b16 %v2223
    %v2420 = vunpack.c.l.b16 %v2224
    %v2421 = vunpack.c.l.b16 %v2225
    %v2422 = vunpack.c.l.b16 %v2226
    %v2423 = vunpack.c.l.b16 %v2227
    %v2424 = vunpack.c.l.b16 %v2228
    %v2425 = vunpack.c.l.b16 %v2229
    %v2426 = vunpack.c.l.b16 %v2230
    %v2427 = vunpack.c.l.b16 %v2231
    %v2428 = vunpack.c.l.b16 %v2232
    %v2429 = vunpack.c.l.b16 %v2233
    %v2430 = vunpack.c.l.b16 %v2234
    %v2431 = vunpack.c.l.b16 %v2235
    %v2432 = vunpack.c.l.b16 %v2236
    %v2433 = vunpack.c.l.b16 %v2237
    %v2434 = vunpack.c.l.b16 %v2238
    %v2435 = vunpack.c.l.b16 %v2239
    %v2436 = vunpack.c.l.b16 %v2240
    %v2437 = vunpack.c.l.b16 %v2241
    %v2438 = vunpack.c.l.b16 %v2242
    %v2439 = vunpack.c.l.b16 %v2243
    %v2440 = vunpack.c.l.b16 %v2244
    %v2441 = vunpack.c.l.b16 %v2245
    %v2442 = vunpack.c.l.b16 %v2246
    %v2443 = vunpack.c.l.b16 %v2247
    %v2444 = vunpack.c.l.b16 %v2248
    %v2445 = vunpack.c.l.b16 %v2249
    %v2446 = vunpack.c.l.b16 %v2250
    %v2447 = vunpack.c.l.b16 %v2251
    %v2448 = vunpack.c.l.b16 %v2252
    %v2449 = vunpack.c.l.b16 %v2253
    %v2450 = vunpack.c.l.b16 %v2254
    %v2451 = vunpack.c.l.b16 %v2255
    %v2452 = vunpack.c.l.b16 %v2256
    %v2453 = vunpack.c.l.b16 %v2257
    %v2454 = vunpack.c.l.b16 %v2258
    %v2455 = vunpack.c.l.b16 %v2259
    %v2456 = vunpack.c.l.b16 %v2260
    %v2457 = vunpack.c.l.b16 %v2261
    %v2458 = vunpack.c.l.b16 %v2262
    %v2459 = vunpack.c.l.b16 %v2263
    %v2460 = vunpack.c.l.b16 %v2264
    %v2461 = vunpack.c.l.b16 %v2265
    %v2462 = vunpack.c.l.b16 %v2266
    %v2463 = vunpack.c.l.b16 %v2267
    %v2464 = vunpack.c.l.b16 %v2268
    %v2465 = vunpack.c.l.b16 %v2269
    %v2466 = vunpack.c.l.b16 %v2270
    %v2467 = vunpack.c.l.b16 %v2271
    %v2468 = vunpack.c.l.b16 %v2272
    %v2469 = vunpack.c.l.b16 %v2273
    %v2470 = vunpack.c.l.b16 %v2274
    %v2471 = vunpack.c.l.b16 %v2275
    %v2472 = vunpack.c.l.b16 %v2276
    %v2473 = vunpack.c.l.b16 %v2277
    %v2474 = vunpack.c.l.b16 %v2278
    %v2475 = vunpack.c.l.b16 %v2279
    %v2476 = vunpack.c.l.b16 %v2280
    %v2477 = vunpack.c.l.b16 %v2281
    %v2478 = vunpack.c.l.b16 %v2282
    %v2479 = vunpack.c.l.b16 %v2283
    %v2480 = vunpack.c.l.b16 %v2284
    %v2481 = vunpack.c.l.b16 %v2285
    %v2482 = vunpack.c.l.b16 %v2286
    %v2483 = vunpack.c.l.b16 %v2287
    %v2484 = vunpack.c.l.b16 %v2288
    %v2485 = vunpack.c.l.b16 %v2289
    %v2486 = vunpack.c.l.b16 %v2290
    %v2487 = vunpack.c.l.b16 %v2291
    %v2488 = vunpack.c.l.b16 %v2292
    %v2489 = vunpack.c.l.b16 %v2293
    %v2490 = vpack.c.b16 %v2395, %v2394
    %v2491 = vpack.c.b16 %v2397, %v2396
    %v2492 = vpack.c.b16 %v2399, %v2398
    %v2493 = vpack.c.b16 %v2401, %v2400
    %v2494 = vpack.c.b16 %v2403, %v2402
    %v2495 = vpack.c.b16 %v2405, %v2404
    %v2496 = vpack.c.b16 %v2407, %v2406
    %v2497 = vpack.c.b16 %v2409, %v2408
    %v2498 = vpack.c.b16 %v2411, %v2410
    %v2499 = vpack.c.b16 %v2413, %v2412
    %v2500 = vpack.c.b16 %v2415, %v2414
    %v2501 = vpack.c.b16 %v2417, %v2416
    %v2502 = vpack.c.b16 %v2419, %v2418
    %v2503 = vpack.c.b16 %v2421, %v2420
    %v2504 = vpack.c.b16 %v2423, %v2422
    %v2505 = vpack.c.b16 %v2425, %v2424
    %v2506 = vpack.c.b16 %v2427, %v2426
    %v2507 = vpack.c.b16 %v2429, %v2428
    %v2508 = vpack.c.b16 %v2431, %v2430
    %v2509 = vpack.c.b16 %v2433, %v2432
    %v2510 = vpack.c.b16 %v2435, %v2434
    %v2511 = vpack.c.b16 %v2437, %v2436
    %v2512 = vpack.c.b16 %v2439, %v2438
    %v2513 = vpack.c.b16 %v2441, %v2440
    %v2514 = vpack.c.b16 %v2443, %v2442
    %v2515 = vpack.c.b16 %v2445, %v2444
    %v2516 = vpack.c.b16 %v2447, %v2446
    %v2517 = vpack.c.b16 %v2449, %v2448
    %v2518 = vpack.c.b16 %v2451, %v2450
    %v2519 = vpack.c.b16 %v2453, %v2452
    %v2520 = vpack.c.b16 %v2455, %v2454
    %v2521 = vpack.c.b16 %v2457, %v2456
    %v2522 = vpack.c.b16 %v2459, %v2458
    %v2523 = vpack.c.b16 %v2461, %v2460
    %v2524 = vpack.c.b16 %v2463, %v2462
    %v2525 = vpack.c.b16 %v2465, %v2464
    %v2526 = vpack.c.b16 %v2467, %v2466
    %v2527 = vpack.c.b16 %v2469, %v2468
    %v2528 = vpack.c.b16 %v2471, %v2470
    %v2529 = vpack.c.b16 %v2473, %v2472
    %v2530 = vpack.c.b16 %v2475, %v2474
    %v2531 = vpack.c.b16 %v2477, %v2476
    %v2532 = vpack.c.b16 %v2479, %v2478
    %v2533 = vpack.c.b16 %v2481, %v2480
    %v2534 = vpack.c.b16 %v2483, %v2482
    %v2535 = vpack.c.b16 %v2485, %v2484
    %v2536 = vpack.c.b16 %v2487, %v2486
    %v2537 = vpack.c.b16 %v2489, %v2488
    %2586 = vmatpush.bf16.msra.mxu0 %v2497
    %2587 = vmatpush.bf16.msra.mxu0 %v2496
    %2588 = vmatpush.bf16.msra.mxu0 %v2495
    %2589 = vmatpush.bf16.msra.mxu0 %v2494
    %2590 = vmatpush.bf16.msra.mxu0 %v2493
    %2591 = vmatpush.bf16.msra.mxu0 %v2492
    %2592 = vmatpush.bf16.msra.mxu0 %v2491
    %2593 = vmatpush.bf16.msra.mxu0 %v2490
    %2594 = vmatmul.bf16.gmra.mxu0 %v2192
    %v2595 = vpop.f32.mrf.mxu0
    %v2596 = vadd.f32 %v2296, %v2595
    %v2597 = vpop.f32.mrf.mxu0
    %2598 = vdwg.mxu0
    %2599 = vmatpush.bf16.msra.mxu0 %v2505
    %2600 = vmatpush.bf16.msra.mxu0 %v2504
    %2601 = vmatpush.bf16.msra.mxu0 %v2503
    %2602 = vmatpush.bf16.msra.mxu0 %v2502
    %2603 = vmatpush.bf16.msra.mxu0 %v2501
    %2604 = vmatpush.bf16.msra.mxu0 %v2500
    %2605 = vmatpush.bf16.msra.mxu0 %v2499
    %2606 = vmatpush.bf16.msra.mxu0 %v2498
    %2607 = vmatmul.bf16.gmra.mxu0 %v2193
    %v2608 = vpop.f32.mrf.mxu0
    %v2609 = vadd.f32 %v2596, %v2608
    %v2610 = vpop.f32.mrf.mxu0
    %2611 = vdwg.mxu0
    %2612 = vmatpush.bf16.msra.mxu0 %v2513
    %2613 = vmatpush.bf16.msra.mxu0 %v2512
    %2614 = vmatpush.bf16.msra.mxu0 %v2511
    %2615 = vmatpush.bf16.msra.mxu0 %v2510
    %2616 = vmatpush.bf16.msra.mxu0 %v2509
    %2617 = vmatpush.bf16.msra.mxu0 %v2508
    %2618 = vmatpush.bf16.msra.mxu0 %v2507
    %2619 = vmatpush.bf16.msra.mxu0 %v2506
    %2620 = vmatmul.bf16.gmra.mxu0 %v2194
    %v2621 = vpop.f32.mrf.mxu0
    %v2622 = vadd.f32 %v2609, %v2621
    %v2623 = vpop.f32.mrf.mxu0
    %2624 = vdwg.mxu0
    %2625 = vmatpush.bf16.msra.mxu0 %v2521
    %2626 = vmatpush.bf16.msra.mxu0 %v2520
    %2627 = vmatpush.bf16.msra.mxu0 %v2519
    %2628 = vmatpush.bf16.msra.mxu0 %v2518
    %2629 = vmatpush.bf16.msra.mxu0 %v2517
    %2630 = vmatpush.bf16.msra.mxu0 %v2516
    %2631 = vmatpush.bf16.msra.mxu0 %v2515
    %2632 = vmatpush.bf16.msra.mxu0 %v2514
    %2633 = vmatmul.bf16.gmra.mxu0 %v2195
    %v2634 = vpop.f32.mrf.mxu0
    %v2635 = vadd.f32 %v2622, %v2634
    %v2636 = vpop.f32.mrf.mxu0
    %2637 = vdwg.mxu0
    %2638 = vmatpush.bf16.msra.mxu0 %v2529
    %2639 = vmatpush.bf16.msra.mxu0 %v2528
    %2640 = vmatpush.bf16.msra.mxu0 %v2527
    %2641 = vmatpush.bf16.msra.mxu0 %v2526
    %2642 = vmatpush.bf16.msra.mxu0 %v2525
    %2643 = vmatpush.bf16.msra.mxu0 %v2524
    %2644 = vmatpush.bf16.msra.mxu0 %v2523
    %2645 = vmatpush.bf16.msra.mxu0 %v2522
    %2646 = vmatmul.bf16.gmra.mxu0 %v2196
    %v2647 = vpop.f32.mrf.mxu0
    %v2648 = vadd.f32 %v2635, %v2647
    %v2649 = vpop.f32.mrf.mxu0
    %2650 = vdwg.mxu0
    %2651 = vmatpush.bf16.msra.mxu0 %v2537
    %2652 = vmatpush.bf16.msra.mxu0 %v2536
    %2653 = vmatpush.bf16.msra.mxu0 %v2535
    %2654 = vmatpush.bf16.msra.mxu0 %v2534
    %2655 = vmatpush.bf16.msra.mxu0 %v2533
    %2656 = vmatpush.bf16.msra.mxu0 %v2532
    %2657 = vmatpush.bf16.msra.mxu0 %v2531
    %2658 = vmatpush.bf16.msra.mxu0 %v2530
    %2659 = vmatmul.bf16.gmra.mxu0 %v2197
    %v2660 = vpop.f32.mrf.mxu0
    %v2661 = vadd.f32 %v2648, %v2660
    %v2662 = vpop.f32.mrf.mxu0
    %2663 = vdwg.mxu0
    %2664 = vst [vmem:[#allocation16] sm:$0x3] %v2661
    // Predicated region
    $region70: #{tpu_custom_call.1} parent=1 // pred_check
      _
    $region71: #{tpu_custom_call.1} parent=1 // pred_check_branch
      %2666 = sbr.rel (0) target = $region73
    $region72: #{tpu_custom_call.1} parent=1 // pred_region
      %2668 = vsyncadd [#allocation4], 0
      %s2670 = sshll.u32 [#allocation16], 4
      %s2671 = int_to_ptr.vmem [resolvable:$true] %s2670
      %s2672 = sshll.u32 %s9, 4
      %s2673 = int_to_ptr.hbm [resolvable:$true] %s2672
      %2675 = dma.vmem_to_hbm [thread:$0]  %s2671, 32, %s2673, [#allocation4]
    $region73: #{tpu_custom_call.1} parent=1 // pred_fallthru
      _
    // Predicated region
    $region74: #{tpu_custom_call.1} parent=1 // pred_check
      _
    $region75: #{tpu_custom_call.1} parent=1 // pred_check_branch
      %2677 = sbr.rel (0) target = $region77
    $region76: #{tpu_custom_call.1} parent=1 // pred_region
      %2679 = dma.done [#allocation4], 32
    $region77: #{tpu_custom_call.1} parent=1 // pred_fallthru
      _
    %2680 = vsyncpa [#allocation3], 1
    %2681 = vsyncpa [#allocation6], 1
    %2682 = vsyncpa [#allocation9], 1
    %2683 = vsyncpa [#allocation12], 1
    %2684 = vsyncpa [#allocation15], 1
    %2685 = vsyncpa [#allocation4], 1

</llo_original>
